<compile_context>
chip_gen: v5e
topology: v5e:2x2
jax: 0.10.0
libtpu: 0.0.40
codegen_flags: <defaults>
</compile_context>

<pallas_src>
import functools
import math

import jax
import jax.numpy as jnp
from jax import lax
from jax.experimental import pallas as pl
from jax.experimental.pallas import tpu as pltpu


# ----------------------------------------------------------------------------
# Kernels
# ----------------------------------------------------------------------------
def _lora_kernel_wide(x_ref, a_ref, b_ref, k_ref, v_ref, ko_ref, vo_ref, *, H, Dh):
    """One (batch, n-tile) grid step for Dh % 128 == 0 (fully lane-dense).

    x_ref : (1, bn, C)         caller dtype   activations tile
    a_ref : (C, L)       bf16  lora_a.weight.T                       (resident)
    b_ref : (L, 2*H*Dh)  bf16  k/v rows of lora_b.weight, transposed (resident)
    k_ref, v_ref, ko_ref, vo_ref : (1, H, bn, Dh)
    """
    x = x_ref[0]                                                     # (bn, C)

    # Low-rank projection (tiny MXU op): (bn, C) @ (C, L) -> (bn, L), f32 acc.
    xa = jnp.dot(x, a_ref[...], preferred_element_type=jnp.float32)

    # One wide matmul emits the whole k/v delta already lane-dense: (bn, 2*H*Dh).
    delta = jnp.dot(xa.astype(b_ref.dtype), b_ref[...],
                    preferred_element_type=jnp.float32)

    # Per-head 128-aligned lane slices -> unmasked full-block adds/stores.
    for h in range(H):                                               # unrolled
        kd = delta[:, h * Dh:(h + 1) * Dh]                           # (bn, Dh)
        vd = delta[:, (H + h) * Dh:(H + h + 1) * Dh]                 # (bn, Dh)
        ko_ref[0, h] = (k_ref[0, h].astype(jnp.float32) + kd).astype(ko_ref.dtype)
        vo_ref[0, h] = (v_ref[0, h].astype(jnp.float32) + vd).astype(vo_ref.dtype)


def _lora_kernel_batched(x_ref, a_ref, b_ref, k_ref, v_ref, ko_ref, vo_ref, *, H):
    """Fallback for Dh % 128 != 0: batched matmul lands the delta in k/v layout.

    b_ref : (2H, L, Dh) bf16.
    """
    # TODO(synk): for Dh < 128, a flattened (B, H, N*Dh) k/v view with a
    # (1, H, block_n*Dh) out spec would make these stores lane-dense.
    x = x_ref[0]                                                     # (bn, C)
    xa = jnp.dot(x, a_ref[...], preferred_element_type=jnp.float32)  # (bn, L)
    xa_b = jnp.broadcast_to(xa.astype(b_ref.dtype)[None],
                            (b_ref.shape[0],) + xa.shape)            # (2H, bn, L)
    delta = lax.dot_general(
        xa_b, b_ref[...],
        dimension_numbers=(((2,), (1,)), ((0,), (0,))),
        preferred_element_type=jnp.float32)                          # (2H, bn, Dh)
    ko_ref[0] = (k_ref[0].astype(jnp.float32) + delta[:H]).astype(ko_ref.dtype)
    vo_ref[0] = (v_ref[0].astype(jnp.float32) + delta[H:]).astype(vo_ref.dtype)


# ----------------------------------------------------------------------------
# Tiling / VMEM plumbing
# ----------------------------------------------------------------------------
def _tpu_vmem_params():
    """Generation-specific (tile_budget_bytes, vmem_limit_bytes, min_n_steps)."""
    try:
        vmem_cap = pltpu.get_tpu_info().vmem_capacity_bytes
    except Exception:
        vmem_cap = 0  # unknown -> conservative (v7x-class) defaults
    if vmem_cap >= 100 * 1024 * 1024:
        # v5e / v6e: 128 MiB physical VMEM, one TensorCore per chip.
        return 64 * 1024 * 1024, 96 * 1024 * 1024, 1
    # v7x-class (or unknown): 64 MiB per TensorCore, 2 TCs per chip -> keep
    # tiles small and (when B == 1) keep >= 2 parallel grid steps.
    return 24 * 1024 * 1024, 48 * 1024 * 1024, 2


def _sublane_multiple(*dtypes):
    """Packed-dtype min sublane tile: f32 -> 8, bf16 -> 16, int8/fp8 -> 32."""
    itemsize = min(jnp.dtype(d).itemsize for d in dtypes)
    return {4: 8, 2: 16, 1: 32}.get(itemsize, 8)


def _choose_block_n(N, C, x_dtype, kv_dtype, budget_bytes, min_n_steps):
    """Largest legal n-tile (dtype-aware sublane multiple, divides N) in budget.

    Per-step resident VMEM estimate, per row:
      x tile (double-buffered)       : 2 * C * x_itemsize
      k/v in + out (double-buffered) : 8 * C * kv_itemsize
      f32 temporaries (delta + slack): ~12 * C
    """
    x_it = jnp.dtype(x_dtype).itemsize
    kv_it = jnp.dtype(kv_dtype).itemsize
    sub = _sublane_multiple(x_dtype, kv_dtype)
    bytes_per_row = 2 * C * x_it + 8 * C * kv_it + 12 * C

    divisors = [d for d in range(sub, N + 1, sub) if N % d == 0]
    for d in sorted(divisors, reverse=True):
        if N // d < min_n_steps:
            continue                      # keep both TCs busy on v7x when B == 1
        if d * bytes_per_row <= budget_bytes:
            return d
    if divisors:
        return divisors[0]                # smallest legal tile (budget floor)
    return N                              # N < sub: full-dim block is the only legal shape


def _resident_spec(block_shape):
    """Constant-index (resident) weight spec; single-buffered when supported."""
    index_map = lambda b, n: (0,) * len(block_shape)
    try:
        return pl.BlockSpec(block_shape, index_map, pipeline_mode=pl.Buffered(1))
    except (TypeError, AttributeError):
        return pl.BlockSpec(block_shape, index_map)


# ----------------------------------------------------------------------------
# Wrapper
# ----------------------------------------------------------------------------
def lora_forward(x, q, k, v, lora_a_weight, lora_b_weight, *, block_n=None,
                 weight_dtype=jnp.bfloat16,
                 vmem_tile_budget=None, vmem_limit_bytes=None):
    """x: (B, N, C); q,k,v: (B, H, N, Dh); lora_a_weight: (L, C); lora_b_weight: (3C, L)."""
    B, N, C = x.shape
    Bk, H, Nk, Dh = k.shape
    L = lora_a_weight.shape[0]
    assert (Bk, Nk) == (B, N) and H * Dh == C
    assert lora_a_weight.shape == (L, C) and lora_b_weight.shape == (3 * C, L)
    assert k.shape == v.shape and k.dtype == v.dtype

    auto_budget, auto_limit, min_n_steps = _tpu_vmem_params()
    if vmem_tile_budget is None:
        vmem_tile_budget = auto_budget
    if vmem_limit_bytes is None:
        vmem_limit_bytes = auto_limit

    sub = _sublane_multiple(x.dtype, k.dtype)
    if block_n is None:
        block_n = _choose_block_n(N, C, x.dtype, k.dtype, vmem_tile_budget,
                                  min_n_steps if B == 1 else 1)
    assert N % block_n == 0 and (block_n % sub == 0 or block_n == N)

    # nn.Linear computes y = x @ W.T; pre-transpose once outside the kernel.
    # Drop the q third of lora_b (never used by the forward) and cast both
    # weights to bf16 (f32 accumulation happens in-kernel).
    a_t = lora_a_weight.T.astype(weight_dtype)                        # (C, L)
    lane_dense = (Dh % 128 == 0)
    if lane_dense:
        # b2[l, g*Dh + d] = lora_b_weight[C + g*Dh + d, l],  g in [0, 2H)
        b_w = lora_b_weight[C:, :].T.astype(weight_dtype)             # (L, 2C)
        kernel = functools.partial(_lora_kernel_wide, H=H, Dh=Dh)
    else:
        b_w = jnp.transpose(
            lora_b_weight[C:, :].reshape(2 * H, Dh, L), (0, 2, 1)
        ).astype(weight_dtype)                                        # (2H, L, Dh)
        kernel = functools.partial(_lora_kernel_batched, H=H)

    grid = (B, N // block_n)
    kv_spec = pl.BlockSpec((1, H, block_n, Dh), lambda b, n: (b, 0, n, 0))

    x_itemsize = jnp.dtype(x.dtype).itemsize
    w_itemsize = jnp.dtype(weight_dtype).itemsize
    kv_itemsize = jnp.dtype(k.dtype).itemsize
    cost = pl.CostEstimate(
        flops=int(2 * B * N * C * L + 2 * B * N * L * 2 * C),
        transcendentals=0,
        bytes_accessed=int(x.size * x_itemsize
                           + (a_t.size + b_w.size) * w_itemsize
                           + 2 * kv_itemsize * (k.size + v.size)),
    )

    k_out, v_out = pl.pallas_call(
        kernel,
        out_shape=(
            jax.ShapeDtypeStruct(k.shape, k.dtype),
            jax.ShapeDtypeStruct(v.shape, v.dtype),
        ),
        grid_spec=pltpu.PrefetchScalarGridSpec(
            num_scalar_prefetch=0,
            grid=grid,
            in_specs=[
                pl.BlockSpec((1, block_n, C), lambda b, n: (b, n, 0)),  # x tile
                _resident_spec(a_t.shape),                              # lora_a.T (resident)
                _resident_spec(b_w.shape),                              # lora_b k/v (resident)
                kv_spec,
                kv_spec,
            ],
            out_specs=[kv_spec, kv_spec],
        ),
        compiler_params=pltpu.CompilerParams(
            dimension_semantics=("parallel", "parallel"),
            vmem_limit_bytes=vmem_limit_bytes,
        ),
        input_output_aliases={3: 0, 4: 1},   # k -> k_out, v -> v_out (in-place when donated)
        cost_estimate=cost,
    )(x, a_t, b_w, k, v)     # x passed in caller dtype: no extra HBM pass

    # q is returned unmodified by the reference forward (q_delta is discarded).
    return q, k_out, v_out


def lora_forward_ref(x, q, k, v, lora_a_weight, lora_b_weight):
    """Pure-JAX reference mirroring the PyTorch code."""
    B, N, C = x.shape
    H = k.shape[1]
    qkv_delta = (x @ lora_a_weight.T) @ lora_b_weight.T               # (B, N, 3C)
    qkv_delta = qkv_delta.reshape(B, N, 3, H, C // H)
    qkv_delta = jnp.transpose(qkv_delta, (2, 0, 3, 1, 4))             # (3, B, H, N, Dh)
    k_delta, v_delta = qkv_delta[1], qkv_delta[2]
    return q, k + k_delta, v + v_delta


if __name__ == "__main__":
    # Small but TPU-friendly shapes: C multiple of 128, head_dim = 128 so the
    # lane-dense wide-matmul path is exercised; block_n=128 exercises N-tiling.
    B, N = 2, 256
    dim = 512            # C
    num_heads = 4
    head_dim = dim // num_heads      # 128
    lora_length = 8

    key = jax.random.PRNGKey(0)
    kx, kq, kk, kv, ka, kb = jax.random.split(key, 6)

    x = jax.random.normal(kx, (B, N, dim), dtype=jnp.float32)
    q = jax.random.normal(kq, (B, num_heads, N, head_dim), dtype=jnp.float32)
    k = jax.random.normal(kk, (B, num_heads, N, head_dim), dtype=jnp.float32)
    v = jax.random.normal(kv, (B, num_heads, N, head_dim), dtype=jnp.float32)

    # lora_a ~ kaiming-uniform-like; lora_b is zeros in the reference __init__,
    # but use small nonzero values so the delta path is actually exercised
    # (forward semantics are init-independent).
    bound_a = 1.0 / math.sqrt(dim)
    lora_a_weight = jax.random.uniform(
        ka, (lora_length, dim), minval=-bound_a, maxval=bound_a, dtype=jnp.float32)
    lora_b_weight = 0.02 * jax.random.normal(
        kb, (dim * 3, lora_length), dtype=jnp.float32)

    q_out, k_out, v_out = lora_forward(
        x, q, k, v, lora_a_weight, lora_b_weight, block_n=128)   # grid = (2, 2)
    jax.block_until_ready((q_out, k_out, v_out))

    q_exp, k_exp, v_exp = lora_forward_ref(x, q, k, v, lora_a_weight, lora_b_weight)

    assert jnp.array_equal(q_out, q_exp)
    assert jnp.allclose(k_out, k_exp, atol=2e-3, rtol=2e-3)
    assert jnp.allclose(v_out, v_exp, atol=2e-3, rtol=2e-3)

    print("KERNEL_OK")
</pallas_src>

<mosaic_0001>
module attributes {stable_mosaic.version = 11 : i64} {
  func.func @_lora_kernel_wide(%arg0: i32, %arg1: i32, %arg2: memref<1x128x512xf32, #tpu.memory_space<vmem>>, %arg3: memref<512x8xbf16, #tpu.memory_space<vmem>>, %arg4: memref<8x1024xbf16, #tpu.memory_space<vmem>>, %arg5: memref<1x4x128x128xf32, #tpu.memory_space<vmem>>, %arg6: memref<1x4x128x128xf32, #tpu.memory_space<vmem>>, %arg7: memref<1x4x128x128xf32, #tpu.memory_space<vmem>>, %arg8: memref<1x4x128x128xf32, #tpu.memory_space<vmem>>) attributes {dimension_semantics = [#tpu.dimension_semantics<parallel>, #tpu.dimension_semantics<parallel>], iteration_bounds = array<i64: 2, 2>, scalar_prefetch = 0 : i64, scratch_operands = 0 : i64, tpu.core_type = #tpu.core_type<tc>, window_params = [{transform_indices = @transform_0, window_bounds = array<i64: 1, 128, 512>}, {pipeline_mode = #tpu.pipeline_mode<synchronous>, transform_indices = @transform_1, window_bounds = array<i64: 512, 8>}, {pipeline_mode = #tpu.pipeline_mode<synchronous>, transform_indices = @transform_2, window_bounds = array<i64: 8, 1024>}, {transform_indices = @transform_3, window_bounds = array<i64: 1, 4, 128, 128>}, {transform_indices = @transform_4, window_bounds = array<i64: 1, 4, 128, 128>}, {transform_indices = @transform_5, window_bounds = array<i64: 1, 4, 128, 128>}, {transform_indices = @transform_6, window_bounds = array<i64: 1, 4, 128, 128>}]} {
    %c0 = arith.constant 0 : index
    %c0_0 = arith.constant 0 : index
    %c0_1 = arith.constant 0 : index
    %0 = vector.load %arg2[%c0, %c0_0, %c0_1] : memref<1x128x512xf32, #tpu.memory_space<vmem>>, vector<1x128x512xf32>
    %1 = vector.shape_cast %0 : vector<1x128x512xf32> to vector<128x512xf32>
    %c0_2 = arith.constant 0 : index
    %c0_3 = arith.constant 0 : index
    %2 = vector.load %arg3[%c0_2, %c0_3] : memref<512x8xbf16, #tpu.memory_space<vmem>>, vector<512x8xbf16>
    %cst = arith.constant dense<0.000000e+00> : vector<128x8xf32>
    %3 = tpu.matmul %1, %2, %cst {dimension_numbers = #tpu.dot_dimension_numbers<[1], [0], [0], [1], [0, 0, 1, 1], [], []>} : vector<128x512xf32>, vector<512x8xbf16>, vector<128x8xf32> -> vector<128x8xf32>
    %4 = arith.truncf %3 : vector<128x8xf32> to vector<128x8xbf16>
    %c0_4 = arith.constant 0 : index
    %c0_5 = arith.constant 0 : index
    %5 = vector.load %arg4[%c0_4, %c0_5] : memref<8x1024xbf16, #tpu.memory_space<vmem>>, vector<8x1024xbf16>
    %cst_6 = arith.constant dense<0.000000e+00> : vector<128x1024xf32>
    %6 = tpu.matmul %4, %5, %cst_6 {dimension_numbers = #tpu.dot_dimension_numbers<[1], [0], [0], [1], [0, 0, 1, 1], [], []>} : vector<128x8xbf16>, vector<8x1024xbf16>, vector<128x1024xf32> -> vector<128x1024xf32>
    %7 = vector.extract_strided_slice %6 {offsets = [0, 0], sizes = [128, 128], strides = [1, 1]} : vector<128x1024xf32> to vector<128x128xf32>
    %8 = vector.extract_strided_slice %6 {offsets = [0, 512], sizes = [128, 128], strides = [1, 1]} : vector<128x1024xf32> to vector<128x128xf32>
    %c0_7 = arith.constant 0 : index
    %c0_8 = arith.constant 0 : index
    %c0_9 = arith.constant 0 : index
    %c0_10 = arith.constant 0 : index
    %9 = vector.load %arg5[%c0_7, %c0_8, %c0_9, %c0_10] : memref<1x4x128x128xf32, #tpu.memory_space<vmem>>, vector<1x1x128x128xf32>
    %10 = vector.shape_cast %9 : vector<1x1x128x128xf32> to vector<128x128xf32>
    %11 = arith.addf %10, %7 : vector<128x128xf32>
    %c0_11 = arith.constant 0 : index
    %c0_12 = arith.constant 0 : index
    %c0_13 = arith.constant 0 : index
    %c0_14 = arith.constant 0 : index
    %12 = vector.load %arg7[%c0_11, %c0_12, %c0_13, %c0_14] : memref<1x4x128x128xf32, #tpu.memory_space<vmem>>, vector<1x1x128x128xf32>
    %13 = vector.shape_cast %12 : vector<1x1x128x128xf32> to vector<128x128xf32>
    %14 = vector.shape_cast %11 : vector<128x128xf32> to vector<1x1x128x128xf32>
    tpu.vector_store %arg7[%c0_11, %c0_12, %c0_13, %c0_14], %14 {strides = array<i32>} : memref<1x4x128x128xf32, #tpu.memory_space<vmem>>, vector<1x1x128x128xf32>,
    %c0_15 = arith.constant 0 : index
    %c0_16 = arith.constant 0 : index
    %c0_17 = arith.constant 0 : index
    %c0_18 = arith.constant 0 : index
    %15 = vector.load %arg6[%c0_15, %c0_16, %c0_17, %c0_18] : memref<1x4x128x128xf32, #tpu.memory_space<vmem>>, vector<1x1x128x128xf32>
    %16 = vector.shape_cast %15 : vector<1x1x128x128xf32> to vector<128x128xf32>
    %17 = arith.addf %16, %8 : vector<128x128xf32>
    %c0_19 = arith.constant 0 : index
    %c0_20 = arith.constant 0 : index
    %c0_21 = arith.constant 0 : index
    %c0_22 = arith.constant 0 : index
    %18 = vector.load %arg8[%c0_19, %c0_20, %c0_21, %c0_22] : memref<1x4x128x128xf32, #tpu.memory_space<vmem>>, vector<1x1x128x128xf32>
    %19 = vector.shape_cast %18 : vector<1x1x128x128xf32> to vector<128x128xf32>
    %20 = vector.shape_cast %17 : vector<128x128xf32> to vector<1x1x128x128xf32>
    tpu.vector_store %arg8[%c0_19, %c0_20, %c0_21, %c0_22], %20 {strides = array<i32>} : memref<1x4x128x128xf32, #tpu.memory_space<vmem>>, vector<1x1x128x128xf32>,
    %21 = vector.extract_strided_slice %6 {offsets = [0, 128], sizes = [128, 128], strides = [1, 1]} : vector<128x1024xf32> to vector<128x128xf32>
    %22 = vector.extract_strided_slice %6 {offsets = [0, 640], sizes = [128, 128], strides = [1, 1]} : vector<128x1024xf32> to vector<128x128xf32>
    %c0_23 = arith.constant 0 : index
    %c1 = arith.constant 1 : index
    %c0_24 = arith.constant 0 : index
    %c0_25 = arith.constant 0 : index
    %23 = vector.load %arg5[%c0_23, %c1, %c0_24, %c0_25] : memref<1x4x128x128xf32, #tpu.memory_space<vmem>>, vector<1x1x128x128xf32>
    %24 = vector.shape_cast %23 : vector<1x1x128x128xf32> to vector<128x128xf32>
    %25 = arith.addf %24, %21 : vector<128x128xf32>
    %c0_26 = arith.constant 0 : index
    %c1_27 = arith.constant 1 : index
    %c0_28 = arith.constant 0 : index
    %c0_29 = arith.constant 0 : index
    %26 = vector.load %arg7[%c0_26, %c1_27, %c0_28, %c0_29] : memref<1x4x128x128xf32, #tpu.memory_space<vmem>>, vector<1x1x128x128xf32>
    %27 = vector.shape_cast %26 : vector<1x1x128x128xf32> to vector<128x128xf32>
    %28 = vector.shape_cast %25 : vector<128x128xf32> to vector<1x1x128x128xf32>
    tpu.vector_store %arg7[%c0_26, %c1_27, %c0_28, %c0_29], %28 {strides = array<i32>} : memref<1x4x128x128xf32, #tpu.memory_space<vmem>>, vector<1x1x128x128xf32>,
    %c0_30 = arith.constant 0 : index
    %c1_31 = arith.constant 1 : index
    %c0_32 = arith.constant 0 : index
    %c0_33 = arith.constant 0 : index
    %29 = vector.load %arg6[%c0_30, %c1_31, %c0_32, %c0_33] : memref<1x4x128x128xf32, #tpu.memory_space<vmem>>, vector<1x1x128x128xf32>
    %30 = vector.shape_cast %29 : vector<1x1x128x128xf32> to vector<128x128xf32>
    %31 = arith.addf %30, %22 : vector<128x128xf32>
    %c0_34 = arith.constant 0 : index
    %c1_35 = arith.constant 1 : index
    %c0_36 = arith.constant 0 : index
    %c0_37 = arith.constant 0 : index
    %32 = vector.load %arg8[%c0_34, %c1_35, %c0_36, %c0_37] : memref<1x4x128x128xf32, #tpu.memory_space<vmem>>, vector<1x1x128x128xf32>
    %33 = vector.shape_cast %32 : vector<1x1x128x128xf32> to vector<128x128xf32>
    %34 = vector.shape_cast %31 : vector<128x128xf32> to vector<1x1x128x128xf32>
    tpu.vector_store %arg8[%c0_34, %c1_35, %c0_36, %c0_37], %34 {strides = array<i32>} : memref<1x4x128x128xf32, #tpu.memory_space<vmem>>, vector<1x1x128x128xf32>,
    %35 = vector.extract_strided_slice %6 {offsets = [0, 256], sizes = [128, 128], strides = [1, 1]} : vector<128x1024xf32> to vector<128x128xf32>
    %36 = vector.extract_strided_slice %6 {offsets = [0, 768], sizes = [128, 128], strides = [1, 1]} : vector<128x1024xf32> to vector<128x128xf32>
    %c0_38 = arith.constant 0 : index
    %c2 = arith.constant 2 : index
    %c0_39 = arith.constant 0 : index
    %c0_40 = arith.constant 0 : index
    %37 = vector.load %arg5[%c0_38, %c2, %c0_39, %c0_40] : memref<1x4x128x128xf32, #tpu.memory_space<vmem>>, vector<1x1x128x128xf32>
    %38 = vector.shape_cast %37 : vector<1x1x128x128xf32> to vector<128x128xf32>
    %39 = arith.addf %38, %35 : vector<128x128xf32>
    %c0_41 = arith.constant 0 : index
    %c2_42 = arith.constant 2 : index
    %c0_43 = arith.constant 0 : index
    %c0_44 = arith.constant 0 : index
    %40 = vector.load %arg7[%c0_41, %c2_42, %c0_43, %c0_44] : memref<1x4x128x128xf32, #tpu.memory_space<vmem>>, vector<1x1x128x128xf32>
    %41 = vector.shape_cast %40 : vector<1x1x128x128xf32> to vector<128x128xf32>
    %42 = vector.shape_cast %39 : vector<128x128xf32> to vector<1x1x128x128xf32>
    tpu.vector_store %arg7[%c0_41, %c2_42, %c0_43, %c0_44], %42 {strides = array<i32>} : memref<1x4x128x128xf32, #tpu.memory_space<vmem>>, vector<1x1x128x128xf32>,
    %c0_45 = arith.constant 0 : index
    %c2_46 = arith.constant 2 : index
    %c0_47 = arith.constant 0 : index
    %c0_48 = arith.constant 0 : index
    %43 = vector.load %arg6[%c0_45, %c2_46, %c0_47, %c0_48] : memref<1x4x128x128xf32, #tpu.memory_space<vmem>>, vector<1x1x128x128xf32>
    %44 = vector.shape_cast %43 : vector<1x1x128x128xf32> to vector<128x128xf32>
    %45 = arith.addf %44, %36 : vector<128x128xf32>
    %c0_49 = arith.constant 0 : index
    %c2_50 = arith.constant 2 : index
    %c0_51 = arith.constant 0 : index
    %c0_52 = arith.constant 0 : index
    %46 = vector.load %arg8[%c0_49, %c2_50, %c0_51, %c0_52] : memref<1x4x128x128xf32, #tpu.memory_space<vmem>>, vector<1x1x128x128xf32>
    %47 = vector.shape_cast %46 : vector<1x1x128x128xf32> to vector<128x128xf32>
    %48 = vector.shape_cast %45 : vector<128x128xf32> to vector<1x1x128x128xf32>
    tpu.vector_store %arg8[%c0_49, %c2_50, %c0_51, %c0_52], %48 {strides = array<i32>} : memref<1x4x128x128xf32, #tpu.memory_space<vmem>>, vector<1x1x128x128xf32>,
    %49 = vector.extract_strided_slice %6 {offsets = [0, 384], sizes = [128, 128], strides = [1, 1]} : vector<128x1024xf32> to vector<128x128xf32>
    %50 = vector.extract_strided_slice %6 {offsets = [0, 896], sizes = [128, 128], strides = [1, 1]} : vector<128x1024xf32> to vector<128x128xf32>
    %c0_53 = arith.constant 0 : index
    %c3 = arith.constant 3 : index
    %c0_54 = arith.constant 0 : index
    %c0_55 = arith.constant 0 : index
    %51 = vector.load %arg5[%c0_53, %c3, %c0_54, %c0_55] : memref<1x4x128x128xf32, #tpu.memory_space<vmem>>, vector<1x1x128x128xf32>
    %52 = vector.shape_cast %51 : vector<1x1x128x128xf32> to vector<128x128xf32>
    %53 = arith.addf %52, %49 : vector<128x128xf32>
    %c0_56 = arith.constant 0 : index
    %c3_57 = arith.constant 3 : index
    %c0_58 = arith.constant 0 : index
    %c0_59 = arith.constant 0 : index
    %54 = vector.load %arg7[%c0_56, %c3_57, %c0_58, %c0_59] : memref<1x4x128x128xf32, #tpu.memory_space<vmem>>, vector<1x1x128x128xf32>
    %55 = vector.shape_cast %54 : vector<1x1x128x128xf32> to vector<128x128xf32>
    %56 = vector.shape_cast %53 : vector<128x128xf32> to vector<1x1x128x128xf32>
    tpu.vector_store %arg7[%c0_56, %c3_57, %c0_58, %c0_59], %56 {strides = array<i32>} : memref<1x4x128x128xf32, #tpu.memory_space<vmem>>, vector<1x1x128x128xf32>,
    %c0_60 = arith.constant 0 : index
    %c3_61 = arith.constant 3 : index
    %c0_62 = arith.constant 0 : index
    %c0_63 = arith.constant 0 : index
    %57 = vector.load %arg6[%c0_60, %c3_61, %c0_62, %c0_63] : memref<1x4x128x128xf32, #tpu.memory_space<vmem>>, vector<1x1x128x128xf32>
    %58 = vector.shape_cast %57 : vector<1x1x128x128xf32> to vector<128x128xf32>
    %59 = arith.addf %58, %50 : vector<128x128xf32>
    %c0_64 = arith.constant 0 : index
    %c3_65 = arith.constant 3 : index
    %c0_66 = arith.constant 0 : index
    %c0_67 = arith.constant 0 : index
    %60 = vector.load %arg8[%c0_64, %c3_65, %c0_66, %c0_67] : memref<1x4x128x128xf32, #tpu.memory_space<vmem>>, vector<1x1x128x128xf32>
    %61 = vector.shape_cast %60 : vector<1x1x128x128xf32> to vector<128x128xf32>
    %62 = vector.shape_cast %59 : vector<128x128xf32> to vector<1x1x128x128xf32>
    tpu.vector_store %arg8[%c0_64, %c3_65, %c0_66, %c0_67], %62 {strides = array<i32>} : memref<1x4x128x128xf32, #tpu.memory_space<vmem>>, vector<1x1x128x128xf32>,
    return
  }
  func.func @transform_0(%arg0: i32, %arg1: i32) -> (i32, i32, i32) {
    %c0_i32 = arith.constant 0 : i32
    %c0_i32_0 = arith.constant 0 : i32
    return %arg0, %arg1, %c0_i32 : i32, i32, i32
  }
  func.func @transform_1(%arg0: i32, %arg1: i32) -> (i32, i32) {
    %c0_i32 = arith.constant 0 : i32
    %c0_i32_0 = arith.constant 0 : i32
    %c0_i32_1 = arith.constant 0 : i32
    return %c0_i32, %c0_i32_0 : i32, i32
  }
  func.func @transform_2(%arg0: i32, %arg1: i32) -> (i32, i32) {
    %c0_i32 = arith.constant 0 : i32
    %c0_i32_0 = arith.constant 0 : i32
    %c0_i32_1 = arith.constant 0 : i32
    return %c0_i32, %c0_i32_0 : i32, i32
  }
  func.func @transform_3(%arg0: i32, %arg1: i32) -> (i32, i32, i32, i32) {
    %c0_i32 = arith.constant 0 : i32
    %c0_i32_0 = arith.constant 0 : i32
    %c0_i32_1 = arith.constant 0 : i32
    return %arg0, %c0_i32, %arg1, %c0_i32_0 : i32, i32, i32, i32
  }
  func.func @transform_4(%arg0: i32, %arg1: i32) -> (i32, i32, i32, i32) {
    %c0_i32 = arith.constant 0 : i32
    %c0_i32_0 = arith.constant 0 : i32
    %c0_i32_1 = arith.constant 0 : i32
    return %arg0, %c0_i32, %arg1, %c0_i32_0 : i32, i32, i32, i32
  }
  func.func @transform_5(%arg0: i32, %arg1: i32) -> (i32, i32, i32, i32) {
    %c0_i32 = arith.constant 0 : i32
    %c0_i32_0 = arith.constant 0 : i32
    %c0_i32_1 = arith.constant 0 : i32
    return %arg0, %c0_i32, %arg1, %c0_i32_0 : i32, i32, i32, i32
  }
  func.func @transform_6(%arg0: i32, %arg1: i32) -> (i32, i32, i32, i32) {
    %c0_i32 = arith.constant 0 : i32
    %c0_i32_0 = arith.constant 0 : i32
    %c0_i32_1 = arith.constant 0 : i32
    return %arg0, %c0_i32, %arg1, %c0_i32_0 : i32, i32, i32, i32
  }
}

</mosaic_0001>

<llo_original>
// kernel: tpu_custom_call.1
$region0: #{tpu_custom_call.1}
  #allocation0 [shape = 'u32[]', space=smem, size = 0x4, offset = 0x4, fixed_abs, tag = 'smem constant byte address 0x4 - core index']
  #allocation1 [shape = 'u32[72,128]{1,0:T(1,128)}', space=vmem, size = 0x9000, scoped, tag = 'internal scratch']
  #allocation10 [shape = 's32[]', space=sflag, size = 0x4, offset = 0, fixed_abs, tag = 'sflag constant byte address 0x0 - dummy sync flag']
  #allocation12 [shape = 's32[]', space=sflag, size = 0x4, offset = 0, fixed_abs, tag = 'sflag constant byte address 0x0 - dummy sync flag']
  #allocation14 [shape = 's32[]', space=sflag, size = 0x4, offset = 0, fixed_abs, tag = 'sflag constant byte address 0x0 - dummy sync flag']
  #allocation16 [shape = 's32[]', space=sflag, size = 0x4, offset = 0, fixed_abs, tag = 'sflag constant byte address 0x0 - dummy sync flag']
  %s0 = inlined_call_operand.vmem [shape: f32[2,256,512], index: 0, kind: input, shape index: {}]
  %s1 = inlined_call_operand.vmem [shape: bf16[512,8], index: 1, kind: input, shape index: {}]
  %s2 = inlined_call_operand.vmem [shape: bf16[8,1024], index: 2, kind: input, shape index: {}]
  %s3 = inlined_call_operand.hbm [shape: f32[2,4,256,128], index: 3, kind: input, shape index: {}, may-alias: {3,5}]
  %s4 = inlined_call_operand.hbm [shape: f32[2,4,256,128], index: 4, kind: input, shape index: {}, may-alias: {4,6}]
  %s5 = inlined_call_operand.hbm [shape: f32[2,4,256,128], index: 5, kind: output, shape index: {0}, may-alias: {3,5}]
  %s6 = inlined_call_operand.hbm [shape: f32[2,4,256,128], index: 6, kind: output, shape index: {1}, may-alias: {4,6}]
  %7 = xla_tuple %s5, %s6
  %s8 = sld [smem:[#allocation0]]
  $region69: #{tpu_custom_call.1} parent=0
    _
  %s10 = ssub.s32 1, %s8
  %s11 = scalar_select 0, %s10, %s8
  $region1: #{tpu_custom_call.1} parent=0
    #allocation2 [shape = 'u8[524288]{0}', space=vmem, size = 0x80000, scoped, tag = 'input window, operand 3']
    #allocation3 [shape = 's32[2]{0}', space=sflag, size = 0x8, scoped, tag = 'scoped memory for tpu_custom_call.1']
    #allocation4 [shape = 's32[2]{0}', space=sflag, size = 0x8, scoped, tag = 'scoped memory for tpu_custom_call.1']
    #allocation5 [shape = 'u8[524288]{0}', space=vmem, size = 0x80000, scoped, tag = 'input window, operand 4']
    #allocation6 [shape = 's32[2]{0}', space=sflag, size = 0x8, scoped, tag = 'scoped memory for tpu_custom_call.1']
    #allocation7 [shape = 'u8[524288]{0}', space=vmem, size = 0x80000, scoped, tag = 'output window, operand 0']
    #allocation8 [shape = 'u8[524288]{0}', space=vmem, size = 0x80000, scoped, tag = 'output window, operand 1']
    #allocation9 [shape = 's32[2]{0}', space=sflag, size = 0x8, scoped, tag = 'scoped memory for tpu_custom_call.1']
    %12 = vsyncpa [#allocation3], 0
    %s13 = scalar_lea.sflag [#allocation3], 1
    %14 = vsyncpa %s13, 0
    %15 = vsyncpa [#allocation6], 0
    %s16 = scalar_lea.sflag [#allocation6], 1
    %17 = vsyncpa %s16, 0
    %18 = vsyncpa [#allocation4], 0
    %s19 = scalar_lea.sflag [#allocation4], 1
    %20 = vsyncpa %s19, 0
    %21 = vsyncpa [#allocation9], 0
    %s22 = scalar_lea.sflag [#allocation9], 1
    %23 = vsyncpa %s22, 0
    loop: start=0, step=1, limit=6
    $region2: #{tpu_custom_call.1} parent=1 // loop_pre_header
      _
    $region3: #{tpu_custom_call.1} parent=1 // loop_header
      %s25 = sphi 0, %s29
      %p26 = scmp.ge.s32.totalorder %s25, 6
      %s32 = sphi 0, %s44
      %s33 = sphi 0, %s40
      %s34 = sphi 0, %s32
      %s35 = sphi 0, %s33
      %s36 = sphi 0, %s34
      %s37 = sphi 0, %s35
      %s49 = sphi 0, %s51
      %s52 = sphi 0, %s49
      %s53 = sphi 0, %s52
      %s69 = sphi 0, %s53
      %s73 = sphi 0, %s73
      %s75 = sphi 0, %s73
      %s76 = sphi 0, %s75
      %s90 = sphi 0, %s76
      %s94 = sphi 0, %s94
      %s96 = sphi 0, %s94
      %s97 = sphi 0, %s96
      %s111 = sphi 0, %s97
      %s119 = sphi 0, %s121
      %s122 = sphi 0, %s119
      %s123 = sphi 0, %s122
      %s139 = sphi 0, %s123
      %s147 = sphi 0, %s149
      %s150 = sphi 0, %s147
      %s151 = sphi 0, %s150
      %s167 = sphi 0, %s151
      %s175 = sphi 0, %s177
      %s178 = sphi 0, %s175
      %s179 = sphi 0, %s178
      %s195 = sphi 0, %s179
      %s203 = sphi 0, %s205
      %s206 = sphi 0, %s203
      %s207 = sphi 0, %s206
      %s223 = sphi 0, %s207
    $region4: #{tpu_custom_call.1} parent=1 // loop_header_branch
      %28 = sbr.rel (%p26) target = $region8
    $region5: #{tpu_custom_call.1} parent=1 // loop_body
      %s30 = ssub.s32 %s25, 1
      %s31 = ssub.s32 %s25, 2
      %s38 = sadd.s32 1, %s33
      %p39 = scmp.ge.s32.totalorder %s38, 2
      %s40 = scalar_select %p39, 0, %s38
      %s41 = sadd.s32 1, %s32
      %s42 = scalar_select %p39, %s41, %s32
      %p43 = scmp.ge.s32.totalorder %s42, 2
      %s44 = scalar_select %p43, 0, %s42
      %s45 = ssub.s32 %s32, %s44
      %s46 = ssub.s32 %s33, %s40
      %s47 = sor.u32 %s45, %s46
      %p48 = scmp.eq.s32.totalorder %s47, 0
      %s50 = sadd.s32 %s49, 1
      %s51 = scalar_select %p48, %s49, %s50
      %p54 = pneg %p48
      %p55 = scmp.eq.s32.totalorder %s25, 3
      %p56 = por %p54, %p55
      %p57 = scmp.ne.s32.totalorder %s49, %s52
      %p58 = scmp.eq.s32.totalorder %s25, 0
      %p59 = por %p57, %p58
      %p60 = scmp.ne.s32.totalorder %s49, %s52
      %p61 = scmp.eq.s32.totalorder %s30, 3
      %p62 = por %p60, %p61
      %p63 = scmp.ne.s32.totalorder %s52, %s53
      %p64 = scmp.eq.s32.totalorder %s30, 0
      %p65 = por %p63, %p64
      %p66 = scmp.ne.s32.totalorder %s52, %s53
      %p67 = scmp.eq.s32.totalorder %s31, 3
      %p68 = por %p66, %p67
      %p70 = scmp.ne.s32.totalorder %s53, %s69
      %p71 = scmp.eq.s32.totalorder %s31, 0
      %p72 = por %p70, %p71
      %s74 = sadd.s32 %s73, 1
      %p77 = scmp.eq.s32.totalorder %s25, 3
      %p78 = scmp.ne.s32.totalorder %s73, %s75
      %p79 = scmp.eq.s32.totalorder %s25, 0
      %p80 = por %p78, %p79
      %p81 = scmp.ne.s32.totalorder %s73, %s75
      %p82 = scmp.eq.s32.totalorder %s30, 3
      %p83 = por %p81, %p82
      %p84 = scmp.ne.s32.totalorder %s75, %s76
      %p85 = scmp.eq.s32.totalorder %s30, 0
      %p86 = por %p84, %p85
      %p87 = scmp.ne.s32.totalorder %s75, %s76
      %p88 = scmp.eq.s32.totalorder %s31, 3
      %p89 = por %p87, %p88
      %p91 = scmp.ne.s32.totalorder %s76, %s90
      %p92 = scmp.eq.s32.totalorder %s31, 0
      %p93 = por %p91, %p92
      %s95 = sadd.s32 %s94, 1
      %p98 = scmp.eq.s32.totalorder %s25, 3
      %p99 = scmp.ne.s32.totalorder %s94, %s96
      %p100 = scmp.eq.s32.totalorder %s25, 0
      %p101 = por %p99, %p100
      %p102 = scmp.ne.s32.totalorder %s94, %s96
      %p103 = scmp.eq.s32.totalorder %s30, 3
      %p104 = por %p102, %p103
      %p105 = scmp.ne.s32.totalorder %s96, %s97
      %p106 = scmp.eq.s32.totalorder %s30, 0
      %p107 = por %p105, %p106
      %p108 = scmp.ne.s32.totalorder %s96, %s97
      %p109 = scmp.eq.s32.totalorder %s31, 3
      %p110 = por %p108, %p109
      %p112 = scmp.ne.s32.totalorder %s97, %s111
      %p113 = scmp.eq.s32.totalorder %s31, 0
      %p114 = por %p112, %p113
      %s115 = ssub.s32 %s32, %s44
      %s116 = ssub.s32 %s33, %s40
      %s117 = sor.u32 %s115, %s116
      %p118 = scmp.eq.s32.totalorder %s117, 0
      %s120 = sadd.s32 %s119, 1
      %s121 = scalar_select %p118, %s119, %s120
      %p124 = pneg %p118
      %p125 = scmp.eq.s32.totalorder %s25, 3
      %p126 = por %p124, %p125
      %p127 = scmp.ne.s32.totalorder %s119, %s122
      %p128 = scmp.eq.s32.totalorder %s25, 0
      %p129 = por %p127, %p128
      %p130 = scmp.ne.s32.totalorder %s119, %s122
      %p131 = scmp.eq.s32.totalorder %s30, 3
      %p132 = por %p130, %p131
      %p133 = scmp.ne.s32.totalorder %s122, %s123
      %p134 = scmp.eq.s32.totalorder %s30, 0
      %p135 = por %p133, %p134
      %p136 = scmp.ne.s32.totalorder %s122, %s123
      %p137 = scmp.eq.s32.totalorder %s31, 3
      %p138 = por %p136, %p137
      %p140 = scmp.ne.s32.totalorder %s123, %s139
      %p141 = scmp.eq.s32.totalorder %s31, 0
      %p142 = por %p140, %p141
      %s143 = ssub.s32 %s32, %s44
      %s144 = ssub.s32 %s33, %s40
      %s145 = sor.u32 %s143, %s144
      %p146 = scmp.eq.s32.totalorder %s145, 0
      %s148 = sadd.s32 %s147, 1
      %s149 = scalar_select %p146, %s147, %s148
      %p152 = pneg %p146
      %p153 = scmp.eq.s32.totalorder %s25, 3
      %p154 = por %p152, %p153
      %p155 = scmp.ne.s32.totalorder %s147, %s150
      %p156 = scmp.eq.s32.totalorder %s25, 0
      %p157 = por %p155, %p156
      %p158 = scmp.ne.s32.totalorder %s147, %s150
      %p159 = scmp.eq.s32.totalorder %s30, 3
      %p160 = por %p158, %p159
      %p161 = scmp.ne.s32.totalorder %s150, %s151
      %p162 = scmp.eq.s32.totalorder %s30, 0
      %p163 = por %p161, %p162
      %p164 = scmp.ne.s32.totalorder %s150, %s151
      %p165 = scmp.eq.s32.totalorder %s31, 3
      %p166 = por %p164, %p165
      %p168 = scmp.ne.s32.totalorder %s151, %s167
      %p169 = scmp.eq.s32.totalorder %s31, 0
      %p170 = por %p168, %p169
      %s171 = ssub.s32 %s32, %s44
      %s172 = ssub.s32 %s33, %s40
      %s173 = sor.u32 %s171, %s172
      %p174 = scmp.eq.s32.totalorder %s173, 0
      %s176 = sadd.s32 %s175, 1
      %s177 = scalar_select %p174, %s175, %s176
      %p180 = pneg %p174
      %p181 = scmp.eq.s32.totalorder %s25, 3
      %p182 = por %p180, %p181
      %p183 = scmp.ne.s32.totalorder %s175, %s178
      %p184 = scmp.eq.s32.totalorder %s25, 0
      %p185 = por %p183, %p184
      %p186 = scmp.ne.s32.totalorder %s175, %s178
      %p187 = scmp.eq.s32.totalorder %s30, 3
      %p188 = por %p186, %p187
      %p189 = scmp.ne.s32.totalorder %s178, %s179
      %p190 = scmp.eq.s32.totalorder %s30, 0
      %p191 = por %p189, %p190
      %p192 = scmp.ne.s32.totalorder %s178, %s179
      %p193 = scmp.eq.s32.totalorder %s31, 3
      %p194 = por %p192, %p193
      %p196 = scmp.ne.s32.totalorder %s179, %s195
      %p197 = scmp.eq.s32.totalorder %s31, 0
      %p198 = por %p196, %p197
      %s199 = ssub.s32 %s32, %s44
      %s200 = ssub.s32 %s33, %s40
      %s201 = sor.u32 %s199, %s200
      %p202 = scmp.eq.s32.totalorder %s201, 0
      %s204 = sadd.s32 %s203, 1
      %s205 = scalar_select %p202, %s203, %s204
      %p208 = pneg %p202
      %p209 = scmp.eq.s32.totalorder %s25, 3
      %p210 = por %p208, %p209
      %p211 = scmp.ne.s32.totalorder %s203, %s206
      %p212 = scmp.eq.s32.totalorder %s25, 0
      %p213 = por %p211, %p212
      %p214 = scmp.ne.s32.totalorder %s203, %s206
      %p215 = scmp.eq.s32.totalorder %s30, 3
      %p216 = por %p214, %p215
      %p217 = scmp.ne.s32.totalorder %s206, %s207
      %p218 = scmp.eq.s32.totalorder %s30, 0
      %p219 = por %p217, %p218
      %p220 = scmp.ne.s32.totalorder %s206, %s207
      %p221 = scmp.eq.s32.totalorder %s31, 3
      %p222 = por %p220, %p221
      %p224 = scmp.ne.s32.totalorder %s207, %s223
      %p225 = scmp.eq.s32.totalorder %s31, 0
      %p226 = por %p224, %p225
      %p227 = scmp.le.s32.totalorder 1, %s25
      %p228 = scmp.lt.s32.totalorder %s25, 5
      %p229 = pnand %p227, %p228
      %p230 = pneg %p229
      // Predicated region
      $region9: #{tpu_custom_call.1} parent=5 // pred_check
        _
      $region10: #{tpu_custom_call.1} parent=5 // pred_check_branch
        %232 = sbr.rel (%p229) target = $region12
      $region11: #{tpu_custom_call.1} parent=5 // pred_region
        %s233 = ssub.s32 %s25, 1
        // Predicated region
        $region13: #{tpu_custom_call.1} parent=11 // pred_check
          %p234 = pneg %p86
        $region14: #{tpu_custom_call.1} parent=11 // pred_check_branch
          %236 = sbr.rel (%p234) target = $region16
        $region15: #{tpu_custom_call.1} parent=11 // pred_region
          _
        $region16: #{tpu_custom_call.1} parent=11 // pred_fallthru
          _
        // Predicated region
        $region17: #{tpu_custom_call.1} parent=11 // pred_check
          %p237 = pneg %p107
        $region18: #{tpu_custom_call.1} parent=11 // pred_check_branch
          %239 = sbr.rel (%p237) target = $region20
        $region19: #{tpu_custom_call.1} parent=11 // pred_region
          _
        $region20: #{tpu_custom_call.1} parent=11 // pred_fallthru
          _
      $region12: #{tpu_custom_call.1} parent=5 // pred_fallthru
        _
      %p240 = scmp.lt.s32.totalorder %s25, 4
      // Predicated region
      $region21: #{tpu_custom_call.1} parent=5 // pred_check
        %p241 = pneg %p240
      $region22: #{tpu_custom_call.1} parent=5 // pred_check_branch
        %243 = sbr.rel (%p241) target = $region24
      $region23: #{tpu_custom_call.1} parent=5 // pred_region
        // Predicated region
        $region25: #{tpu_custom_call.1} parent=23 // pred_check
          %p244 = pneg %p59
        $region26: #{tpu_custom_call.1} parent=23 // pred_check_branch
          %246 = sbr.rel (%p244) target = $region28
        $region27: #{tpu_custom_call.1} parent=23 // pred_region
          %s247 = smul.u32 16, %s33
          %p248 = scmp.lt.s32.totalorder %s32, 1
          %s249 = scalar_select %p248, %s32, 1
          %p250 = scmp.lt.s32.totalorder %s247, 31
          %s251 = scalar_select %p250, %s247, 31
          %s252 = smul.addr %s251, 4
          %s253 = smul.addr %s249, 128
          %s254 = sadd.s32 %s252, %s253
          %s255 = smul.addr %s254, 8
          %s256 = scalar_lea.vmem %s0, %s255
          %s257 = smul.u32 16, %s33
        $region28: #{tpu_custom_call.1} parent=23 // pred_fallthru
          _
        // Predicated region
        $region29: #{tpu_custom_call.1} parent=23 // pred_check
          %p258 = pneg %p129
        $region30: #{tpu_custom_call.1} parent=23 // pred_check_branch
          %260 = sbr.rel (%p258) target = $region32
        $region31: #{tpu_custom_call.1} parent=23 // pred_region
          #allocation11 [shape = 'u32[6]{0}', space=smem, size = 0x18, scoped, tag = 'DMA stride descriptor']
          %s261 = sand.u32 %s119, 1
          %s262 = scalar_lea.sflag [#allocation3], %s261
          %s263 = sand.u32 %s119, 1
          %s264 = smul.addr %s263, 512
          %s265 = scalar_lea.vmem [#allocation2], %s264
          %s266 = smul.u32 16, %s33
          %268 = vsyncadd %s262, 0
          %s269 = smul.addr %s32, 128
          %s270 = sadd.s32 %s266, %s269
          %s271 = smul.addr %s270, 8
          %s272 = scalar_lea.hbm %s3, %s271
          %s274 = sshll.u32 1, 14
          %s275 = sxor.u32 4294967295, %s274
          %s277 = sld [smem:[#allocation0]]
          %s278 = sadd.s32 2, %s277
          %s280 = sshll.u32 7, 26
          %s281 = sxor.u32 4294967295, %s280
          %s282 = sand.u32 0, %s281
          %s283 = sshll.u32 %s278, 26
          %s284 = sor.u32 %s282, %s283
          %s285 = sshll.u32 %s272, 4
          %s286 = int_to_ptr.hbm [resolvable:$true] %s285
          %s287 = sshll.u32 %s265, 4
          %s288 = int_to_ptr.vmem [resolvable:$true] %s287
          %294 = sst [smem:[#allocation11]] 4096
          %s295 = scalar_lea.smem [#allocation11], 1
          %296 = sst [smem:[%s295]] 2048
          %s297 = scalar_lea.smem [#allocation11], 2
          %298 = sst [smem:[%s297]] 16
          %s299 = scalar_lea.smem [#allocation11], 3
          %300 = sst [smem:[%s299]] 128
          %s301 = scalar_lea.smem [#allocation11], 4
          %302 = sst [smem:[%s301]] 128
          %s303 = scalar_lea.smem [#allocation11], 5
          %304 = sst [smem:[%s303]] 8
          %306 = dma.general %s286, 8192, %s288, %s262, [#allocation10], [#allocation11], %s284, 0
        $region32: #{tpu_custom_call.1} parent=23 // pred_fallthru
          _
        // Predicated region
        $region33: #{tpu_custom_call.1} parent=23 // pred_check
          %p307 = pneg %p157
        $region34: #{tpu_custom_call.1} parent=23 // pred_check_branch
          %309 = sbr.rel (%p307) target = $region36
        $region35: #{tpu_custom_call.1} parent=23 // pred_region
          #allocation13 [shape = 'u32[6]{0}', space=smem, size = 0x18, scoped, tag = 'DMA stride descriptor']
          %s310 = sand.u32 %s147, 1
          %s311 = scalar_lea.sflag [#allocation6], %s310
          %s312 = sand.u32 %s147, 1
          %s313 = smul.addr %s312, 512
          %s314 = scalar_lea.vmem [#allocation5], %s313
          %s315 = smul.u32 16, %s33
          %317 = vsyncadd %s311, 0
          %s318 = smul.addr %s32, 128
          %s319 = sadd.s32 %s315, %s318
          %s320 = smul.addr %s319, 8
          %s321 = scalar_lea.hbm %s4, %s320
          %s323 = sshll.u32 1, 14
          %s324 = sxor.u32 4294967295, %s323
          %s326 = sld [smem:[#allocation0]]
          %s327 = sadd.s32 2, %s326
          %s329 = sshll.u32 7, 26
          %s330 = sxor.u32 4294967295, %s329
          %s331 = sand.u32 0, %s330
          %s332 = sshll.u32 %s327, 26
          %s333 = sor.u32 %s331, %s332
          %s334 = sshll.u32 %s321, 4
          %s335 = int_to_ptr.hbm [resolvable:$true] %s334
          %s336 = sshll.u32 %s314, 4
          %s337 = int_to_ptr.vmem [resolvable:$true] %s336
          %343 = sst [smem:[#allocation13]] 4096
          %s344 = scalar_lea.smem [#allocation13], 1
          %345 = sst [smem:[%s344]] 2048
          %s346 = scalar_lea.smem [#allocation13], 2
          %347 = sst [smem:[%s346]] 16
          %s348 = scalar_lea.smem [#allocation13], 3
          %349 = sst [smem:[%s348]] 128
          %s350 = scalar_lea.smem [#allocation13], 4
          %351 = sst [smem:[%s350]] 128
          %s352 = scalar_lea.smem [#allocation13], 5
          %353 = sst [smem:[%s352]] 8
          %355 = dma.general %s335, 8192, %s337, %s311, [#allocation12], [#allocation13], %s333, 0
        $region36: #{tpu_custom_call.1} parent=23 // pred_fallthru
          _
      $region24: #{tpu_custom_call.1} parent=5 // pred_fallthru
        _
      %p356 = scmp.le.s32.totalorder 1, %s25
      %p357 = scmp.lt.s32.totalorder %s25, 5
      %p358 = pnand %p356, %p357
      %p359 = pneg %p358
      // Predicated region
      $region37: #{tpu_custom_call.1} parent=5 // pred_check
        _
      $region38: #{tpu_custom_call.1} parent=5 // pred_check_branch
        %361 = sbr.rel (%p358) target = $region40
      $region39: #{tpu_custom_call.1} parent=5 // pred_region
        %s362 = ssub.s32 %s25, 1
        %s363 = sand.u32 %s122, 1
        %s364 = scalar_lea.sflag [#allocation3], %s363
        %s365 = sand.u32 %s122, 1
        %s366 = smul.addr %s365, 512
        %s367 = scalar_lea.vmem [#allocation2], %s366
        // Predicated region
        $region41: #{tpu_custom_call.1} parent=39 // pred_check
          %p368 = pneg %p135
        $region42: #{tpu_custom_call.1} parent=39 // pred_check_branch
          %370 = sbr.rel (%p368) target = $region44
        $region43: #{tpu_custom_call.1} parent=39 // pred_region
          %372 = dma.done %s364, 8192
        $region44: #{tpu_custom_call.1} parent=39 // pred_fallthru
          _
        %s373 = sand.u32 %s150, 1
        %s374 = scalar_lea.sflag [#allocation6], %s373
        %s375 = sand.u32 %s150, 1
        %s376 = smul.addr %s375, 512
        %s377 = scalar_lea.vmem [#allocation5], %s376
        // Predicated region
        $region45: #{tpu_custom_call.1} parent=39 // pred_check
          %p378 = pneg %p163
        $region46: #{tpu_custom_call.1} parent=39 // pred_check_branch
          %380 = sbr.rel (%p378) target = $region48
        $region47: #{tpu_custom_call.1} parent=39 // pred_region
          %382 = dma.done %s374, 8192
        $region48: #{tpu_custom_call.1} parent=39 // pred_fallthru
          _
        %s383 = smul.u32 16, %s35
        %p384 = scmp.lt.s32.totalorder %s34, 1
        %s385 = scalar_select %p384, %s34, 1
        %p386 = scmp.lt.s32.totalorder %s383, 31
        %s387 = scalar_select %p386, %s383, 31
        %s388 = smul.addr %s387, 4
        %s389 = smul.addr %s385, 128
        %s390 = sadd.s32 %s388, %s389
        %s391 = smul.addr %s390, 8
        %s392 = scalar_lea.vmem %s0, %s391
        %p393 = pneg %p65
        %p394 = pneg %p62
        %p395 = pneg %p86
        %p396 = pneg %p83
        %p397 = pneg %p107
        %p398 = pneg %p104
        %s399 = sand.u32 %s122, 1
        %s400 = scalar_lea.sflag [#allocation3], %s399
        %s401 = sand.u32 %s122, 1
        %s402 = smul.addr %s401, 512
        %s403 = scalar_lea.vmem [#allocation2], %s402
        %p404 = pneg %p135
        %p405 = pneg %p132
        %s406 = sand.u32 %s150, 1
        %s407 = scalar_lea.sflag [#allocation6], %s406
        %s408 = sand.u32 %s150, 1
        %s409 = smul.addr %s408, 512
        %s410 = scalar_lea.vmem [#allocation5], %s409
        %p411 = pneg %p163
        %p412 = pneg %p160
        %p413 = pneg %p191
        %p414 = pneg %p188
        %s415 = sand.u32 %s178, 1
        %s416 = scalar_lea.sflag [#allocation4], %s415
        %s417 = sand.u32 %s178, 1
        %s418 = smul.addr %s417, 512
        %s419 = scalar_lea.vmem [#allocation7], %s418
        %p420 = pneg %p219
        %p421 = pneg %p216
        %s422 = sand.u32 %s206, 1
        %s423 = scalar_lea.sflag [#allocation9], %s422
        %s424 = sand.u32 %s206, 1
        %s425 = smul.addr %s424, 512
        %s426 = scalar_lea.vmem [#allocation8], %s425
        %s427 = smul.u32 16, %s35
        %p428 = scmp.lt.s32.totalorder %s34, 1
        %s429 = scalar_select %p428, %s34, 1
        %p430 = scmp.lt.s32.totalorder %s427, 31
        %s431 = scalar_select %p430, %s427, 31
        %s432 = smul.addr %s431, 4
        %s433 = smul.addr %s429, 128
        %s434 = sadd.s32 %s432, %s433
        %s435 = smul.addr %s434, 8
        %s436 = scalar_lea.vmem %s0, %s435
        %s437 = smul.u32 16, %s35
        %s438 = smul.u32 16, %s35
        %s439 = smul.u32 16, %s35
        %s440 = smul.u32 16, %s35
        %s441 = smul.u32 16, %s35
        %v443 = vld [vmem:[%s436] sm:$0xff]
        %v444 = vld [vmem:[%s436 + $0x8] sm:$0xff]
        %v445 = vld [vmem:[%s436 + $0x10] sm:$0xff]
        %v446 = vld [vmem:[%s436 + $0x18] sm:$0xff]
        %v447 = vld [vmem:[%s436 + $0x20] sm:$0xff]
        %v448 = vld [vmem:[%s436 + $0x28] sm:$0xff]
        %v449 = vld [vmem:[%s436 + $0x30] sm:$0xff]
        %v450 = vld [vmem:[%s436 + $0x38] sm:$0xff]
        %v451 = vld [vmem:[%s436 + $0x40] sm:$0xff]
        %v452 = vld [vmem:[%s436 + $0x48] sm:$0xff]
        %v453 = vld [vmem:[%s436 + $0x50] sm:$0xff]
        %v454 = vld [vmem:[%s436 + $0x58] sm:$0xff]
        %v455 = vld [vmem:[%s436 + $0x60] sm:$0xff]
        %v456 = vld [vmem:[%s436 + $0x68] sm:$0xff]
        %v457 = vld [vmem:[%s436 + $0x70] sm:$0xff]
        %v458 = vld [vmem:[%s436 + $0x78] sm:$0xff]
        %v459 = vld [vmem:[%s436 + $0x80] sm:$0xff]
        %v460 = vld [vmem:[%s436 + $0x88] sm:$0xff]
        %v461 = vld [vmem:[%s436 + $0x90] sm:$0xff]
        %v462 = vld [vmem:[%s436 + $0x98] sm:$0xff]
        %v463 = vld [vmem:[%s436 + $0xa0] sm:$0xff]
        %v464 = vld [vmem:[%s436 + $0xa8] sm:$0xff]
        %v465 = vld [vmem:[%s436 + $0xb0] sm:$0xff]
        %v466 = vld [vmem:[%s436 + $0xb8] sm:$0xff]
        %v467 = vld [vmem:[%s436 + $0xc0] sm:$0xff]
        %v468 = vld [vmem:[%s436 + $0xc8] sm:$0xff]
        %v469 = vld [vmem:[%s436 + $0xd0] sm:$0xff]
        %v470 = vld [vmem:[%s436 + $0xd8] sm:$0xff]
        %v471 = vld [vmem:[%s436 + $0xe0] sm:$0xff]
        %v472 = vld [vmem:[%s436 + $0xe8] sm:$0xff]
        %v473 = vld [vmem:[%s436 + $0xf0] sm:$0xff]
        %v474 = vld [vmem:[%s436 + $0xf8] sm:$0xff]
        %v475 = vld [vmem:[%s436 + $0x100] sm:$0xff]
        %v476 = vld [vmem:[%s436 + $0x108] sm:$0xff]
        %v477 = vld [vmem:[%s436 + $0x110] sm:$0xff]
        %v478 = vld [vmem:[%s436 + $0x118] sm:$0xff]
        %v479 = vld [vmem:[%s436 + $0x120] sm:$0xff]
        %v480 = vld [vmem:[%s436 + $0x128] sm:$0xff]
        %v481 = vld [vmem:[%s436 + $0x130] sm:$0xff]
        %v482 = vld [vmem:[%s436 + $0x138] sm:$0xff]
        %v483 = vld [vmem:[%s436 + $0x140] sm:$0xff]
        %v484 = vld [vmem:[%s436 + $0x148] sm:$0xff]
        %v485 = vld [vmem:[%s436 + $0x150] sm:$0xff]
        %v486 = vld [vmem:[%s436 + $0x158] sm:$0xff]
        %v487 = vld [vmem:[%s436 + $0x160] sm:$0xff]
        %v488 = vld [vmem:[%s436 + $0x168] sm:$0xff]
        %v489 = vld [vmem:[%s436 + $0x170] sm:$0xff]
        %v490 = vld [vmem:[%s436 + $0x178] sm:$0xff]
        %v491 = vld [vmem:[%s436 + $0x180] sm:$0xff]
        %v492 = vld [vmem:[%s436 + $0x188] sm:$0xff]
        %v493 = vld [vmem:[%s436 + $0x190] sm:$0xff]
        %v494 = vld [vmem:[%s436 + $0x198] sm:$0xff]
        %v495 = vld [vmem:[%s436 + $0x1a0] sm:$0xff]
        %v496 = vld [vmem:[%s436 + $0x1a8] sm:$0xff]
        %v497 = vld [vmem:[%s436 + $0x1b0] sm:$0xff]
        %v498 = vld [vmem:[%s436 + $0x1b8] sm:$0xff]
        %v499 = vld [vmem:[%s436 + $0x1c0] sm:$0xff]
        %v500 = vld [vmem:[%s436 + $0x1c8] sm:$0xff]
        %v501 = vld [vmem:[%s436 + $0x1d0] sm:$0xff]
        %v502 = vld [vmem:[%s436 + $0x1d8] sm:$0xff]
        %v503 = vld [vmem:[%s436 + $0x1e0] sm:$0xff]
        %v504 = vld [vmem:[%s436 + $0x1e8] sm:$0xff]
        %v505 = vld [vmem:[%s436 + $0x1f0] sm:$0xff]
        %v506 = vld [vmem:[%s436 + $0x1f8] sm:$0xff]
        %v507 = vld [vmem:[%s1] sm:$0xf]
        %v508 = vld [vmem:[%s1 + $0x4] sm:$0xf]
        %v509 = vld [vmem:[%s1 + $0x8] sm:$0xf]
        %v510 = vld [vmem:[%s1 + $0xc] sm:$0xf]
        %v511 = vld [vmem:[%s1 + $0x10] sm:$0xf]
        %v512 = vld [vmem:[%s1 + $0x14] sm:$0xf]
        %v513 = vld [vmem:[%s1 + $0x18] sm:$0xf]
        %v514 = vld [vmem:[%s1 + $0x1c] sm:$0xf]
        %v515 = vld [vmem:[%s1 + $0x20] sm:$0xf]
        %v516 = vld [vmem:[%s1 + $0x24] sm:$0xf]
        %v517 = vld [vmem:[%s1 + $0x28] sm:$0xf]
        %v518 = vld [vmem:[%s1 + $0x2c] sm:$0xf]
        %v519 = vld [vmem:[%s1 + $0x30] sm:$0xf]
        %v520 = vld [vmem:[%s1 + $0x34] sm:$0xf]
        %v521 = vld [vmem:[%s1 + $0x38] sm:$0xf]
        %v522 = vld [vmem:[%s1 + $0x3c] sm:$0xf]
        %v523 = vld [vmem:[%s1 + $0x40] sm:$0xf]
        %v524 = vld [vmem:[%s1 + $0x44] sm:$0xf]
        %v525 = vld [vmem:[%s1 + $0x48] sm:$0xf]
        %v526 = vld [vmem:[%s1 + $0x4c] sm:$0xf]
        %v527 = vld [vmem:[%s1 + $0x50] sm:$0xf]
        %v528 = vld [vmem:[%s1 + $0x54] sm:$0xf]
        %v529 = vld [vmem:[%s1 + $0x58] sm:$0xf]
        %v530 = vld [vmem:[%s1 + $0x5c] sm:$0xf]
        %v531 = vld [vmem:[%s1 + $0x60] sm:$0xf]
        %v532 = vld [vmem:[%s1 + $0x64] sm:$0xf]
        %v533 = vld [vmem:[%s1 + $0x68] sm:$0xf]
        %v534 = vld [vmem:[%s1 + $0x6c] sm:$0xf]
        %v535 = vld [vmem:[%s1 + $0x70] sm:$0xf]
        %v536 = vld [vmem:[%s1 + $0x74] sm:$0xf]
        %v537 = vld [vmem:[%s1 + $0x78] sm:$0xf]
        %v538 = vld [vmem:[%s1 + $0x7c] sm:$0xf]
        %v539 = vld [vmem:[%s1 + $0x80] sm:$0xf]
        %v540 = vld [vmem:[%s1 + $0x84] sm:$0xf]
        %v541 = vld [vmem:[%s1 + $0x88] sm:$0xf]
        %v542 = vld [vmem:[%s1 + $0x8c] sm:$0xf]
        %v543 = vld [vmem:[%s1 + $0x90] sm:$0xf]
        %v544 = vld [vmem:[%s1 + $0x94] sm:$0xf]
        %v545 = vld [vmem:[%s1 + $0x98] sm:$0xf]
        %v546 = vld [vmem:[%s1 + $0x9c] sm:$0xf]
        %v547 = vld [vmem:[%s1 + $0xa0] sm:$0xf]
        %v548 = vld [vmem:[%s1 + $0xa4] sm:$0xf]
        %v549 = vld [vmem:[%s1 + $0xa8] sm:$0xf]
        %v550 = vld [vmem:[%s1 + $0xac] sm:$0xf]
        %v551 = vld [vmem:[%s1 + $0xb0] sm:$0xf]
        %v552 = vld [vmem:[%s1 + $0xb4] sm:$0xf]
        %v553 = vld [vmem:[%s1 + $0xb8] sm:$0xf]
        %v554 = vld [vmem:[%s1 + $0xbc] sm:$0xf]
        %v555 = vld [vmem:[%s1 + $0xc0] sm:$0xf]
        %v556 = vld [vmem:[%s1 + $0xc4] sm:$0xf]
        %v557 = vld [vmem:[%s1 + $0xc8] sm:$0xf]
        %v558 = vld [vmem:[%s1 + $0xcc] sm:$0xf]
        %v559 = vld [vmem:[%s1 + $0xd0] sm:$0xf]
        %v560 = vld [vmem:[%s1 + $0xd4] sm:$0xf]
        %v561 = vld [vmem:[%s1 + $0xd8] sm:$0xf]
        %v562 = vld [vmem:[%s1 + $0xdc] sm:$0xf]
        %v563 = vld [vmem:[%s1 + $0xe0] sm:$0xf]
        %v564 = vld [vmem:[%s1 + $0xe4] sm:$0xf]
        %v565 = vld [vmem:[%s1 + $0xe8] sm:$0xf]
        %v566 = vld [vmem:[%s1 + $0xec] sm:$0xf]
        %v567 = vld [vmem:[%s1 + $0xf0] sm:$0xf]
        %v568 = vld [vmem:[%s1 + $0xf4] sm:$0xf]
        %v569 = vld [vmem:[%s1 + $0xf8] sm:$0xf]
        %v570 = vld [vmem:[%s1 + $0xfc] sm:$0xf]
        %v635 = vunpack.c.l.b16 %v507
        %v636 = vunpack.c.l.b16 %v508
        %v637 = vunpack.c.l.b16 %v509
        %v638 = vunpack.c.l.b16 %v510
        %v639 = vunpack.c.l.b16 %v511
        %v640 = vunpack.c.l.b16 %v512
        %v641 = vunpack.c.l.b16 %v513
        %v642 = vunpack.c.l.b16 %v514
        %v643 = vunpack.c.l.b16 %v515
        %v644 = vunpack.c.l.b16 %v516
        %v645 = vunpack.c.l.b16 %v517
        %v646 = vunpack.c.l.b16 %v518
        %v647 = vunpack.c.l.b16 %v519
        %v648 = vunpack.c.l.b16 %v520
        %v649 = vunpack.c.l.b16 %v521
        %v650 = vunpack.c.l.b16 %v522
        %v651 = vunpack.c.l.b16 %v523
        %v652 = vunpack.c.l.b16 %v524
        %v653 = vunpack.c.l.b16 %v525
        %v654 = vunpack.c.l.b16 %v526
        %v655 = vunpack.c.l.b16 %v527
        %v656 = vunpack.c.l.b16 %v528
        %v657 = vunpack.c.l.b16 %v529
        %v658 = vunpack.c.l.b16 %v530
        %v659 = vunpack.c.l.b16 %v531
        %v660 = vunpack.c.l.b16 %v532
        %v661 = vunpack.c.l.b16 %v533
        %v662 = vunpack.c.l.b16 %v534
        %v663 = vunpack.c.l.b16 %v535
        %v664 = vunpack.c.l.b16 %v536
        %v665 = vunpack.c.l.b16 %v537
        %v666 = vunpack.c.l.b16 %v538
        %v667 = vunpack.c.l.b16 %v539
        %v668 = vunpack.c.l.b16 %v540
        %v669 = vunpack.c.l.b16 %v541
        %v670 = vunpack.c.l.b16 %v542
        %v671 = vunpack.c.l.b16 %v543
        %v672 = vunpack.c.l.b16 %v544
        %v673 = vunpack.c.l.b16 %v545
        %v674 = vunpack.c.l.b16 %v546
        %v675 = vunpack.c.l.b16 %v547
        %v676 = vunpack.c.l.b16 %v548
        %v677 = vunpack.c.l.b16 %v549
        %v678 = vunpack.c.l.b16 %v550
        %v679 = vunpack.c.l.b16 %v551
        %v680 = vunpack.c.l.b16 %v552
        %v681 = vunpack.c.l.b16 %v553
        %v682 = vunpack.c.l.b16 %v554
        %v683 = vunpack.c.l.b16 %v555
        %v684 = vunpack.c.l.b16 %v556
        %v685 = vunpack.c.l.b16 %v557
        %v686 = vunpack.c.l.b16 %v558
        %v687 = vunpack.c.l.b16 %v559
        %v688 = vunpack.c.l.b16 %v560
        %v689 = vunpack.c.l.b16 %v561
        %v690 = vunpack.c.l.b16 %v562
        %v691 = vunpack.c.l.b16 %v563
        %v692 = vunpack.c.l.b16 %v564
        %v693 = vunpack.c.l.b16 %v565
        %v694 = vunpack.c.l.b16 %v566
        %v695 = vunpack.c.l.b16 %v567
        %v696 = vunpack.c.l.b16 %v568
        %v697 = vunpack.c.l.b16 %v569
        %v698 = vunpack.c.l.b16 %v570
        %v699 = vpack.c.b16 %v636, %v635
        %v700 = vpack.c.b16 %v638, %v637
        %v701 = vpack.c.b16 %v640, %v639
        %v702 = vpack.c.b16 %v642, %v641
        %v703 = vpack.c.b16 %v644, %v643
        %v704 = vpack.c.b16 %v646, %v645
        %v705 = vpack.c.b16 %v648, %v647
        %v706 = vpack.c.b16 %v650, %v649
        %v707 = vpack.c.b16 %v652, %v651
        %v708 = vpack.c.b16 %v654, %v653
        %v709 = vpack.c.b16 %v656, %v655
        %v710 = vpack.c.b16 %v658, %v657
        %v711 = vpack.c.b16 %v660, %v659
        %v712 = vpack.c.b16 %v662, %v661
        %v713 = vpack.c.b16 %v664, %v663
        %v714 = vpack.c.b16 %v666, %v665
        %v715 = vpack.c.b16 %v668, %v667
        %v716 = vpack.c.b16 %v670, %v669
        %v717 = vpack.c.b16 %v672, %v671
        %v718 = vpack.c.b16 %v674, %v673
        %v719 = vpack.c.b16 %v676, %v675
        %v720 = vpack.c.b16 %v678, %v677
        %v721 = vpack.c.b16 %v680, %v679
        %v722 = vpack.c.b16 %v682, %v681
        %v723 = vpack.c.b16 %v684, %v683
        %v724 = vpack.c.b16 %v686, %v685
        %v725 = vpack.c.b16 %v688, %v687
        %v726 = vpack.c.b16 %v690, %v689
        %v727 = vpack.c.b16 %v692, %v691
        %v728 = vpack.c.b16 %v694, %v693
        %v729 = vpack.c.b16 %v696, %v695
        %v730 = vpack.c.b16 %v698, %v697
        %763 = vmatpush.bf16.msra.mxu0 %v706
        %764 = vmatpush.bf16.msra.mxu0 %v705
        %765 = vmatpush.bf16.msra.mxu0 %v704
        %766 = vmatpush.bf16.msra.mxu0 %v703
        %767 = vmatpush.bf16.msra.mxu0 %v702
        %768 = vmatpush.bf16.msra.mxu0 %v701
        %769 = vmatpush.bf16.msra.mxu0 %v700
        %770 = vmatpush.bf16.msra.mxu0 %v699
        %771 = vmatmul.f32.gmra.mxu0 %v443
        %v772 = vpop.f32.mrf.mxu0
        %v773 = vadd.f32 0.0, %v772
        %774 = vmatmul.f32.gmra.mxu0 %v447
        %v775 = vpop.f32.mrf.mxu0
        %v776 = vadd.f32 0.0, %v775
        %777 = vmatmul.f32.gmra.mxu0 %v451
        %v778 = vpop.f32.mrf.mxu0
        %v779 = vadd.f32 0.0, %v778
        %780 = vmatmul.f32.gmra.mxu0 %v455
        %v781 = vpop.f32.mrf.mxu0
        %v782 = vadd.f32 0.0, %v781
        %783 = vmatmul.f32.gmra.mxu0 %v459
        %v784 = vpop.f32.mrf.mxu0
        %v785 = vadd.f32 0.0, %v784
        %786 = vmatmul.f32.gmra.mxu0 %v463
        %v787 = vpop.f32.mrf.mxu0
        %v788 = vadd.f32 0.0, %v787
        %789 = vmatmul.f32.gmra.mxu0 %v467
        %v790 = vpop.f32.mrf.mxu0
        %v791 = vadd.f32 0.0, %v790
        %792 = vmatmul.f32.gmra.mxu0 %v471
        %v793 = vpop.f32.mrf.mxu0
        %v794 = vadd.f32 0.0, %v793
        %795 = vmatmul.f32.gmra.mxu0 %v475
        %v796 = vpop.f32.mrf.mxu0
        %v797 = vadd.f32 0.0, %v796
        %798 = vmatmul.f32.gmra.mxu0 %v479
        %v799 = vpop.f32.mrf.mxu0
        %v800 = vadd.f32 0.0, %v799
        %801 = vmatmul.f32.gmra.mxu0 %v483
        %v802 = vpop.f32.mrf.mxu0
        %v803 = vadd.f32 0.0, %v802
        %804 = vmatmul.f32.gmra.mxu0 %v487
        %v805 = vpop.f32.mrf.mxu0
        %v806 = vadd.f32 0.0, %v805
        %807 = vmatmul.f32.gmra.mxu0 %v491
        %v808 = vpop.f32.mrf.mxu0
        %v809 = vadd.f32 0.0, %v808
        %810 = vmatmul.f32.gmra.mxu0 %v495
        %v811 = vpop.f32.mrf.mxu0
        %v812 = vadd.f32 0.0, %v811
        %813 = vmatmul.f32.gmra.mxu0 %v499
        %v814 = vpop.f32.mrf.mxu0
        %v815 = vadd.f32 0.0, %v814
        %816 = vmatmul.f32.gmra.mxu0 %v503
        %v817 = vpop.f32.mrf.mxu0
        %v818 = vadd.f32 0.0, %v817
        %819 = vdwg.mxu0
        %820 = vmatpush.bf16.msra.mxu0 %v714
        %821 = vmatpush.bf16.msra.mxu0 %v713
        %822 = vmatpush.bf16.msra.mxu0 %v712
        %823 = vmatpush.bf16.msra.mxu0 %v711
        %824 = vmatpush.bf16.msra.mxu0 %v710
        %825 = vmatpush.bf16.msra.mxu0 %v709
        %826 = vmatpush.bf16.msra.mxu0 %v708
        %827 = vmatpush.bf16.msra.mxu0 %v707
        %828 = vmatmul.f32.gmra.mxu0 %v444
        %v829 = vpop.f32.mrf.mxu0
        %v830 = vadd.f32 %v773, %v829
        %831 = vmatmul.f32.gmra.mxu0 %v448
        %v832 = vpop.f32.mrf.mxu0
        %v833 = vadd.f32 %v776, %v832
        %834 = vmatmul.f32.gmra.mxu0 %v452
        %v835 = vpop.f32.mrf.mxu0
        %v836 = vadd.f32 %v779, %v835
        %837 = vmatmul.f32.gmra.mxu0 %v456
        %v838 = vpop.f32.mrf.mxu0
        %v839 = vadd.f32 %v782, %v838
        %840 = vmatmul.f32.gmra.mxu0 %v460
        %v841 = vpop.f32.mrf.mxu0
        %v842 = vadd.f32 %v785, %v841
        %843 = vmatmul.f32.gmra.mxu0 %v464
        %v844 = vpop.f32.mrf.mxu0
        %v845 = vadd.f32 %v788, %v844
        %846 = vmatmul.f32.gmra.mxu0 %v468
        %v847 = vpop.f32.mrf.mxu0
        %v848 = vadd.f32 %v791, %v847
        %849 = vmatmul.f32.gmra.mxu0 %v472
        %v850 = vpop.f32.mrf.mxu0
        %v851 = vadd.f32 %v794, %v850
        %852 = vmatmul.f32.gmra.mxu0 %v476
        %v853 = vpop.f32.mrf.mxu0
        %v854 = vadd.f32 %v797, %v853
        %855 = vmatmul.f32.gmra.mxu0 %v480
        %v856 = vpop.f32.mrf.mxu0
        %v857 = vadd.f32 %v800, %v856
        %858 = vmatmul.f32.gmra.mxu0 %v484
        %v859 = vpop.f32.mrf.mxu0
        %v860 = vadd.f32 %v803, %v859
        %861 = vmatmul.f32.gmra.mxu0 %v488
        %v862 = vpop.f32.mrf.mxu0
        %v863 = vadd.f32 %v806, %v862
        %864 = vmatmul.f32.gmra.mxu0 %v492
        %v865 = vpop.f32.mrf.mxu0
        %v866 = vadd.f32 %v809, %v865
        %867 = vmatmul.f32.gmra.mxu0 %v496
        %v868 = vpop.f32.mrf.mxu0
        %v869 = vadd.f32 %v812, %v868
        %870 = vmatmul.f32.gmra.mxu0 %v500
        %v871 = vpop.f32.mrf.mxu0
        %v872 = vadd.f32 %v815, %v871
        %873 = vmatmul.f32.gmra.mxu0 %v504
        %v874 = vpop.f32.mrf.mxu0
        %v875 = vadd.f32 %v818, %v874
        %876 = vdwg.mxu0
        %877 = vmatpush.bf16.msra.mxu0 %v722
        %878 = vmatpush.bf16.msra.mxu0 %v721
        %879 = vmatpush.bf16.msra.mxu0 %v720
        %880 = vmatpush.bf16.msra.mxu0 %v719
        %881 = vmatpush.bf16.msra.mxu0 %v718
        %882 = vmatpush.bf16.msra.mxu0 %v717
        %883 = vmatpush.bf16.msra.mxu0 %v716
        %884 = vmatpush.bf16.msra.mxu0 %v715
        %885 = vmatmul.f32.gmra.mxu0 %v445
        %v886 = vpop.f32.mrf.mxu0
        %v887 = vadd.f32 %v830, %v886
        %888 = vmatmul.f32.gmra.mxu0 %v449
        %v889 = vpop.f32.mrf.mxu0
        %v890 = vadd.f32 %v833, %v889
        %891 = vmatmul.f32.gmra.mxu0 %v453
        %v892 = vpop.f32.mrf.mxu0
        %v893 = vadd.f32 %v836, %v892
        %894 = vmatmul.f32.gmra.mxu0 %v457
        %v895 = vpop.f32.mrf.mxu0
        %v896 = vadd.f32 %v839, %v895
        %897 = vmatmul.f32.gmra.mxu0 %v461
        %v898 = vpop.f32.mrf.mxu0
        %v899 = vadd.f32 %v842, %v898
        %900 = vmatmul.f32.gmra.mxu0 %v465
        %v901 = vpop.f32.mrf.mxu0
        %v902 = vadd.f32 %v845, %v901
        %903 = vmatmul.f32.gmra.mxu0 %v469
        %v904 = vpop.f32.mrf.mxu0
        %v905 = vadd.f32 %v848, %v904
        %906 = vmatmul.f32.gmra.mxu0 %v473
        %v907 = vpop.f32.mrf.mxu0
        %v908 = vadd.f32 %v851, %v907
        %909 = vmatmul.f32.gmra.mxu0 %v477
        %v910 = vpop.f32.mrf.mxu0
        %v911 = vadd.f32 %v854, %v910
        %912 = vmatmul.f32.gmra.mxu0 %v481
        %v913 = vpop.f32.mrf.mxu0
        %v914 = vadd.f32 %v857, %v913
        %915 = vmatmul.f32.gmra.mxu0 %v485
        %v916 = vpop.f32.mrf.mxu0
        %v917 = vadd.f32 %v860, %v916
        %918 = vmatmul.f32.gmra.mxu0 %v489
        %v919 = vpop.f32.mrf.mxu0
        %v920 = vadd.f32 %v863, %v919
        %921 = vmatmul.f32.gmra.mxu0 %v493
        %v922 = vpop.f32.mrf.mxu0
        %v923 = vadd.f32 %v866, %v922
        %924 = vmatmul.f32.gmra.mxu0 %v497
        %v925 = vpop.f32.mrf.mxu0
        %v926 = vadd.f32 %v869, %v925
        %927 = vmatmul.f32.gmra.mxu0 %v501
        %v928 = vpop.f32.mrf.mxu0
        %v929 = vadd.f32 %v872, %v928
        %930 = vmatmul.f32.gmra.mxu0 %v505
        %v931 = vpop.f32.mrf.mxu0
        %v932 = vadd.f32 %v875, %v931
        %933 = vdwg.mxu0
        %934 = vmatpush.bf16.msra.mxu0 %v730
        %935 = vmatpush.bf16.msra.mxu0 %v729
        %936 = vmatpush.bf16.msra.mxu0 %v728
        %937 = vmatpush.bf16.msra.mxu0 %v727
        %938 = vmatpush.bf16.msra.mxu0 %v726
        %939 = vmatpush.bf16.msra.mxu0 %v725
        %940 = vmatpush.bf16.msra.mxu0 %v724
        %941 = vmatpush.bf16.msra.mxu0 %v723
        %942 = vmatmul.f32.gmra.mxu0 %v446
        %v943 = vpop.f32.mrf.mxu0
        %v944 = vadd.f32 %v887, %v943
        %945 = vmatmul.f32.gmra.mxu0 %v450
        %v946 = vpop.f32.mrf.mxu0
        %v947 = vadd.f32 %v890, %v946
        %948 = vmatmul.f32.gmra.mxu0 %v454
        %v949 = vpop.f32.mrf.mxu0
        %v950 = vadd.f32 %v893, %v949
        %951 = vmatmul.f32.gmra.mxu0 %v458
        %v952 = vpop.f32.mrf.mxu0
        %v953 = vadd.f32 %v896, %v952
        %954 = vmatmul.f32.gmra.mxu0 %v462
        %v955 = vpop.f32.mrf.mxu0
        %v956 = vadd.f32 %v899, %v955
        %957 = vmatmul.f32.gmra.mxu0 %v466
        %v958 = vpop.f32.mrf.mxu0
        %v959 = vadd.f32 %v902, %v958
        %960 = vmatmul.f32.gmra.mxu0 %v470
        %v961 = vpop.f32.mrf.mxu0
        %v962 = vadd.f32 %v905, %v961
        %963 = vmatmul.f32.gmra.mxu0 %v474
        %v964 = vpop.f32.mrf.mxu0
        %v965 = vadd.f32 %v908, %v964
        %966 = vmatmul.f32.gmra.mxu0 %v478
        %v967 = vpop.f32.mrf.mxu0
        %v968 = vadd.f32 %v911, %v967
        %969 = vmatmul.f32.gmra.mxu0 %v482
        %v970 = vpop.f32.mrf.mxu0
        %v971 = vadd.f32 %v914, %v970
        %972 = vmatmul.f32.gmra.mxu0 %v486
        %v973 = vpop.f32.mrf.mxu0
        %v974 = vadd.f32 %v917, %v973
        %975 = vmatmul.f32.gmra.mxu0 %v490
        %v976 = vpop.f32.mrf.mxu0
        %v977 = vadd.f32 %v920, %v976
        %978 = vmatmul.f32.gmra.mxu0 %v494
        %v979 = vpop.f32.mrf.mxu0
        %v980 = vadd.f32 %v923, %v979
        %981 = vmatmul.f32.gmra.mxu0 %v498
        %v982 = vpop.f32.mrf.mxu0
        %v983 = vadd.f32 %v926, %v982
        %984 = vmatmul.f32.gmra.mxu0 %v502
        %v985 = vpop.f32.mrf.mxu0
        %v986 = vadd.f32 %v929, %v985
        %987 = vmatmul.f32.gmra.mxu0 %v506
        %v988 = vpop.f32.mrf.mxu0
        %v989 = vadd.f32 %v932, %v988
        %990 = vdwg.mxu0
        %v991 = vpack.c.bf16 %v947, %v944
        %v992 = vpack.c.bf16 %v953, %v950
        %v993 = vpack.c.bf16 %v959, %v956
        %v994 = vpack.c.bf16 %v965, %v962
        %v995 = vpack.c.bf16 %v971, %v968
        %v996 = vpack.c.bf16 %v977, %v974
        %v997 = vpack.c.bf16 %v983, %v980
        %v998 = vpack.c.bf16 %v989, %v986
        %v999 = vld [vmem:[%s2] sm:$0xff]
        %v1000 = vld [vmem:[%s2 + $0x8] sm:$0xff]
        %v1001 = vld [vmem:[%s2 + $0x10] sm:$0xff]
        %v1002 = vld [vmem:[%s2 + $0x18] sm:$0xff]
        %v1007 = vunpack.c.l.b16 %v999
        %v1008 = vunpack.c.h.b16 %v999
        %v1009 = vunpack.c.l.b16 %v1000
        %v1010 = vunpack.c.h.b16 %v1000
        %v1011 = vunpack.c.l.b16 %v1001
        %v1012 = vunpack.c.h.b16 %v1001
        %v1013 = vunpack.c.l.b16 %v1002
        %v1014 = vunpack.c.h.b16 %v1002
        %v1015 = vpack.c.b16 %v1007, %v1007
        %v1016 = vpack.c.b16 %v1008, %v1008
        %v1017 = vpack.c.b16 %v1009, %v1009
        %v1018 = vpack.c.b16 %v1010, %v1010
        %v1019 = vpack.c.b16 %v1011, %v1011
        %v1020 = vpack.c.b16 %v1012, %v1012
        %v1021 = vpack.c.b16 %v1013, %v1013
        %v1022 = vpack.c.b16 %v1014, %v1014
        %vm1023 = vcmask 64512
        %v1025 = vsel %vm1023, %v991, 0
        %v1028 = vsel %vm1023, %v992, 0
        %v1031 = vsel %vm1023, %v993, 0
        %v1034 = vsel %vm1023, %v994, 0
        %v1037 = vsel %vm1023, %v995, 0
        %v1040 = vsel %vm1023, %v996, 0
        %v1043 = vsel %vm1023, %v997, 0
        %v1046 = vsel %vm1023, %v998, 0
        %vm1048 = vcmask 1043456
        %v1050 = vsel %vm1048, %v1015, 0
        %v1053 = vsel %vm1048, %v1016, 0
        %v1056 = vsel %vm1048, %v1017, 0
        %v1059 = vsel %vm1048, %v1018, 0
        %v1062 = vsel %vm1048, %v1019, 0
        %v1065 = vsel %vm1048, %v1020, 0
        %v1068 = vsel %vm1048, %v1021, 0
        %v1071 = vsel %vm1048, %v1022, 0
        %1073 = vmatpush.bf16.msra.mxu0 0
        %1074 = vmatpush.bf16.msra.mxu0 0
        %1075 = vmatpush.bf16.msra.mxu0 0
        %1076 = vmatpush.bf16.msra.mxu0 0
        %1077 = vmatpush.bf16.msra.mxu0 0
        %1078 = vmatpush.bf16.msra.mxu0 0
        %1079 = vmatpush.bf16.msra.mxu0 0
        %1080 = vmatpush.bf16.msra.mxu0 %v1050
        %1081 = vmatmul.bf16.gmra.mxu0 %v1025
        %v1082 = vpop.f32.mrf.mxu0
        %v1083 = vadd.f32 0.0, %v1082
        %v1084 = vpop.f32.mrf.mxu0
        %v1085 = vadd.f32 0.0, %v1084
        %1086 = vmatmul.bf16.gmra.mxu0 %v1028
        %v1087 = vpop.f32.mrf.mxu0
        %v1088 = vadd.f32 0.0, %v1087
        %v1089 = vpop.f32.mrf.mxu0
        %v1090 = vadd.f32 0.0, %v1089
        %1091 = vmatmul.bf16.gmra.mxu0 %v1031
        %v1092 = vpop.f32.mrf.mxu0
        %v1093 = vadd.f32 0.0, %v1092
        %v1094 = vpop.f32.mrf.mxu0
        %v1095 = vadd.f32 0.0, %v1094
        %1096 = vmatmul.bf16.gmra.mxu0 %v1034
        %v1097 = vpop.f32.mrf.mxu0
        %v1098 = vadd.f32 0.0, %v1097
        %v1099 = vpop.f32.mrf.mxu0
        %v1100 = vadd.f32 0.0, %v1099
        %1101 = vmatmul.bf16.gmra.mxu0 %v1037
        %v1102 = vpop.f32.mrf.mxu0
        %v1103 = vadd.f32 0.0, %v1102
        %v1104 = vpop.f32.mrf.mxu0
        %v1105 = vadd.f32 0.0, %v1104
        %1106 = vmatmul.bf16.gmra.mxu0 %v1040
        %v1107 = vpop.f32.mrf.mxu0
        %v1108 = vadd.f32 0.0, %v1107
        %v1109 = vpop.f32.mrf.mxu0
        %v1110 = vadd.f32 0.0, %v1109
        %1111 = vmatmul.bf16.gmra.mxu0 %v1043
        %v1112 = vpop.f32.mrf.mxu0
        %v1113 = vadd.f32 0.0, %v1112
        %v1114 = vpop.f32.mrf.mxu0
        %v1115 = vadd.f32 0.0, %v1114
        %1116 = vmatmul.bf16.gmra.mxu0 %v1046
        %v1117 = vpop.f32.mrf.mxu0
        %v1118 = vadd.f32 0.0, %v1117
        %v1119 = vpop.f32.mrf.mxu0
        %v1120 = vadd.f32 0.0, %v1119
        %1121 = vdwg.mxu0
        %1122 = vmatpush.bf16.msra.mxu0 0
        %1123 = vmatpush.bf16.msra.mxu0 0
        %1124 = vmatpush.bf16.msra.mxu0 0
        %1125 = vmatpush.bf16.msra.mxu0 0
        %1126 = vmatpush.bf16.msra.mxu0 0
        %1127 = vmatpush.bf16.msra.mxu0 0
        %1128 = vmatpush.bf16.msra.mxu0 0
        %1129 = vmatpush.bf16.msra.mxu0 %v1053
        %1130 = vmatmul.bf16.gmra.mxu0 %v1025
        %v1131 = vpop.f32.mrf.mxu0
        %v1132 = vadd.f32 0.0, %v1131
        %v1133 = vpop.f32.mrf.mxu0
        %v1134 = vadd.f32 0.0, %v1133
        %1135 = vmatmul.bf16.gmra.mxu0 %v1028
        %v1136 = vpop.f32.mrf.mxu0
        %v1137 = vadd.f32 0.0, %v1136
        %v1138 = vpop.f32.mrf.mxu0
        %v1139 = vadd.f32 0.0, %v1138
        %1140 = vmatmul.bf16.gmra.mxu0 %v1031
        %v1141 = vpop.f32.mrf.mxu0
        %v1142 = vadd.f32 0.0, %v1141
        %v1143 = vpop.f32.mrf.mxu0
        %v1144 = vadd.f32 0.0, %v1143
        %1145 = vmatmul.bf16.gmra.mxu0 %v1034
        %v1146 = vpop.f32.mrf.mxu0
        %v1147 = vadd.f32 0.0, %v1146
        %v1148 = vpop.f32.mrf.mxu0
        %v1149 = vadd.f32 0.0, %v1148
        %1150 = vmatmul.bf16.gmra.mxu0 %v1037
        %v1151 = vpop.f32.mrf.mxu0
        %v1152 = vadd.f32 0.0, %v1151
        %v1153 = vpop.f32.mrf.mxu0
        %v1154 = vadd.f32 0.0, %v1153
        %1155 = vmatmul.bf16.gmra.mxu0 %v1040
        %v1156 = vpop.f32.mrf.mxu0
        %v1157 = vadd.f32 0.0, %v1156
        %v1158 = vpop.f32.mrf.mxu0
        %v1159 = vadd.f32 0.0, %v1158
        %1160 = vmatmul.bf16.gmra.mxu0 %v1043
        %v1161 = vpop.f32.mrf.mxu0
        %v1162 = vadd.f32 0.0, %v1161
        %v1163 = vpop.f32.mrf.mxu0
        %v1164 = vadd.f32 0.0, %v1163
        %1165 = vmatmul.bf16.gmra.mxu0 %v1046
        %v1166 = vpop.f32.mrf.mxu0
        %v1167 = vadd.f32 0.0, %v1166
        %v1168 = vpop.f32.mrf.mxu0
        %v1169 = vadd.f32 0.0, %v1168
        %1170 = vdwg.mxu0
        %1171 = vmatpush.bf16.msra.mxu0 0
        %1172 = vmatpush.bf16.msra.mxu0 0
        %1173 = vmatpush.bf16.msra.mxu0 0
        %1174 = vmatpush.bf16.msra.mxu0 0
        %1175 = vmatpush.bf16.msra.mxu0 0
        %1176 = vmatpush.bf16.msra.mxu0 0
        %1177 = vmatpush.bf16.msra.mxu0 0
        %1178 = vmatpush.bf16.msra.mxu0 %v1056
        %1179 = vmatmul.bf16.gmra.mxu0 %v1025
        %v1180 = vpop.f32.mrf.mxu0
        %v1181 = vadd.f32 0.0, %v1180
        %v1182 = vpop.f32.mrf.mxu0
        %v1183 = vadd.f32 0.0, %v1182
        %1184 = vmatmul.bf16.gmra.mxu0 %v1028
        %v1185 = vpop.f32.mrf.mxu0
        %v1186 = vadd.f32 0.0, %v1185
        %v1187 = vpop.f32.mrf.mxu0
        %v1188 = vadd.f32 0.0, %v1187
        %1189 = vmatmul.bf16.gmra.mxu0 %v1031
        %v1190 = vpop.f32.mrf.mxu0
        %v1191 = vadd.f32 0.0, %v1190
        %v1192 = vpop.f32.mrf.mxu0
        %v1193 = vadd.f32 0.0, %v1192
        %1194 = vmatmul.bf16.gmra.mxu0 %v1034
        %v1195 = vpop.f32.mrf.mxu0
        %v1196 = vadd.f32 0.0, %v1195
        %v1197 = vpop.f32.mrf.mxu0
        %v1198 = vadd.f32 0.0, %v1197
        %1199 = vmatmul.bf16.gmra.mxu0 %v1037
        %v1200 = vpop.f32.mrf.mxu0
        %v1201 = vadd.f32 0.0, %v1200
        %v1202 = vpop.f32.mrf.mxu0
        %v1203 = vadd.f32 0.0, %v1202
        %1204 = vmatmul.bf16.gmra.mxu0 %v1040
        %v1205 = vpop.f32.mrf.mxu0
        %v1206 = vadd.f32 0.0, %v1205
        %v1207 = vpop.f32.mrf.mxu0
        %v1208 = vadd.f32 0.0, %v1207
        %1209 = vmatmul.bf16.gmra.mxu0 %v1043
        %v1210 = vpop.f32.mrf.mxu0
        %v1211 = vadd.f32 0.0, %v1210
        %v1212 = vpop.f32.mrf.mxu0
        %v1213 = vadd.f32 0.0, %v1212
        %1214 = vmatmul.bf16.gmra.mxu0 %v1046
        %v1215 = vpop.f32.mrf.mxu0
        %v1216 = vadd.f32 0.0, %v1215
        %v1217 = vpop.f32.mrf.mxu0
        %v1218 = vadd.f32 0.0, %v1217
        %1219 = vdwg.mxu0
        %1220 = vmatpush.bf16.msra.mxu0 0
        %1221 = vmatpush.bf16.msra.mxu0 0
        %1222 = vmatpush.bf16.msra.mxu0 0
        %1223 = vmatpush.bf16.msra.mxu0 0
        %1224 = vmatpush.bf16.msra.mxu0 0
        %1225 = vmatpush.bf16.msra.mxu0 0
        %1226 = vmatpush.bf16.msra.mxu0 0
        %1227 = vmatpush.bf16.msra.mxu0 %v1059
        %1228 = vmatmul.bf16.gmra.mxu0 %v1025
        %v1229 = vpop.f32.mrf.mxu0
        %v1230 = vadd.f32 0.0, %v1229
        %v1231 = vpop.f32.mrf.mxu0
        %v1232 = vadd.f32 0.0, %v1231
        %1233 = vmatmul.bf16.gmra.mxu0 %v1028
        %v1234 = vpop.f32.mrf.mxu0
        %v1235 = vadd.f32 0.0, %v1234
        %v1236 = vpop.f32.mrf.mxu0
        %v1237 = vadd.f32 0.0, %v1236
        %1238 = vmatmul.bf16.gmra.mxu0 %v1031
        %v1239 = vpop.f32.mrf.mxu0
        %v1240 = vadd.f32 0.0, %v1239
        %v1241 = vpop.f32.mrf.mxu0
        %v1242 = vadd.f32 0.0, %v1241
        %1243 = vmatmul.bf16.gmra.mxu0 %v1034
        %v1244 = vpop.f32.mrf.mxu0
        %v1245 = vadd.f32 0.0, %v1244
        %v1246 = vpop.f32.mrf.mxu0
        %v1247 = vadd.f32 0.0, %v1246
        %1248 = vmatmul.bf16.gmra.mxu0 %v1037
        %v1249 = vpop.f32.mrf.mxu0
        %v1250 = vadd.f32 0.0, %v1249
        %v1251 = vpop.f32.mrf.mxu0
        %v1252 = vadd.f32 0.0, %v1251
        %1253 = vmatmul.bf16.gmra.mxu0 %v1040
        %v1254 = vpop.f32.mrf.mxu0
        %v1255 = vadd.f32 0.0, %v1254
        %v1256 = vpop.f32.mrf.mxu0
        %v1257 = vadd.f32 0.0, %v1256
        %1258 = vmatmul.bf16.gmra.mxu0 %v1043
        %v1259 = vpop.f32.mrf.mxu0
        %v1260 = vadd.f32 0.0, %v1259
        %v1261 = vpop.f32.mrf.mxu0
        %v1262 = vadd.f32 0.0, %v1261
        %1263 = vmatmul.bf16.gmra.mxu0 %v1046
        %v1264 = vpop.f32.mrf.mxu0
        %v1265 = vadd.f32 0.0, %v1264
        %v1266 = vpop.f32.mrf.mxu0
        %v1267 = vadd.f32 0.0, %v1266
        %1268 = vdwg.mxu0
        %1269 = vmatpush.bf16.msra.mxu0 0
        %1270 = vmatpush.bf16.msra.mxu0 0
        %1271 = vmatpush.bf16.msra.mxu0 0
        %1272 = vmatpush.bf16.msra.mxu0 0
        %1273 = vmatpush.bf16.msra.mxu0 0
        %1274 = vmatpush.bf16.msra.mxu0 0
        %1275 = vmatpush.bf16.msra.mxu0 0
        %1276 = vmatpush.bf16.msra.mxu0 %v1062
        %1277 = vmatmul.bf16.gmra.mxu0 %v1025
        %v1278 = vpop.f32.mrf.mxu0
        %v1279 = vadd.f32 0.0, %v1278
        %v1280 = vpop.f32.mrf.mxu0
        %v1281 = vadd.f32 0.0, %v1280
        %1282 = vmatmul.bf16.gmra.mxu0 %v1028
        %v1283 = vpop.f32.mrf.mxu0
        %v1284 = vadd.f32 0.0, %v1283
        %v1285 = vpop.f32.mrf.mxu0
        %v1286 = vadd.f32 0.0, %v1285
        %1287 = vmatmul.bf16.gmra.mxu0 %v1031
        %v1288 = vpop.f32.mrf.mxu0
        %v1289 = vadd.f32 0.0, %v1288
        %v1290 = vpop.f32.mrf.mxu0
        %v1291 = vadd.f32 0.0, %v1290
        %1292 = vmatmul.bf16.gmra.mxu0 %v1034
        %v1293 = vpop.f32.mrf.mxu0
        %v1294 = vadd.f32 0.0, %v1293
        %v1295 = vpop.f32.mrf.mxu0
        %v1296 = vadd.f32 0.0, %v1295
        %1297 = vmatmul.bf16.gmra.mxu0 %v1037
        %v1298 = vpop.f32.mrf.mxu0
        %v1299 = vadd.f32 0.0, %v1298
        %v1300 = vpop.f32.mrf.mxu0
        %v1301 = vadd.f32 0.0, %v1300
        %1302 = vmatmul.bf16.gmra.mxu0 %v1040
        %v1303 = vpop.f32.mrf.mxu0
        %v1304 = vadd.f32 0.0, %v1303
        %v1305 = vpop.f32.mrf.mxu0
        %v1306 = vadd.f32 0.0, %v1305
        %1307 = vmatmul.bf16.gmra.mxu0 %v1043
        %v1308 = vpop.f32.mrf.mxu0
        %v1309 = vadd.f32 0.0, %v1308
        %v1310 = vpop.f32.mrf.mxu0
        %v1311 = vadd.f32 0.0, %v1310
        %1312 = vmatmul.bf16.gmra.mxu0 %v1046
        %v1313 = vpop.f32.mrf.mxu0
        %v1314 = vadd.f32 0.0, %v1313
        %v1315 = vpop.f32.mrf.mxu0
        %v1316 = vadd.f32 0.0, %v1315
        %1317 = vdwg.mxu0
        %1318 = vmatpush.bf16.msra.mxu0 0
        %1319 = vmatpush.bf16.msra.mxu0 0
        %1320 = vmatpush.bf16.msra.mxu0 0
        %1321 = vmatpush.bf16.msra.mxu0 0
        %1322 = vmatpush.bf16.msra.mxu0 0
        %1323 = vmatpush.bf16.msra.mxu0 0
        %1324 = vmatpush.bf16.msra.mxu0 0
        %1325 = vmatpush.bf16.msra.mxu0 %v1065
        %1326 = vmatmul.bf16.gmra.mxu0 %v1025
        %v1327 = vpop.f32.mrf.mxu0
        %v1328 = vadd.f32 0.0, %v1327
        %v1329 = vpop.f32.mrf.mxu0
        %v1330 = vadd.f32 0.0, %v1329
        %1331 = vmatmul.bf16.gmra.mxu0 %v1028
        %v1332 = vpop.f32.mrf.mxu0
        %v1333 = vadd.f32 0.0, %v1332
        %v1334 = vpop.f32.mrf.mxu0
        %v1335 = vadd.f32 0.0, %v1334
        %1336 = vmatmul.bf16.gmra.mxu0 %v1031
        %v1337 = vpop.f32.mrf.mxu0
        %v1338 = vadd.f32 0.0, %v1337
        %v1339 = vpop.f32.mrf.mxu0
        %v1340 = vadd.f32 0.0, %v1339
        %1341 = vmatmul.bf16.gmra.mxu0 %v1034
        %v1342 = vpop.f32.mrf.mxu0
        %v1343 = vadd.f32 0.0, %v1342
        %v1344 = vpop.f32.mrf.mxu0
        %v1345 = vadd.f32 0.0, %v1344
        %1346 = vmatmul.bf16.gmra.mxu0 %v1037
        %v1347 = vpop.f32.mrf.mxu0
        %v1348 = vadd.f32 0.0, %v1347
        %v1349 = vpop.f32.mrf.mxu0
        %v1350 = vadd.f32 0.0, %v1349
        %1351 = vmatmul.bf16.gmra.mxu0 %v1040
        %v1352 = vpop.f32.mrf.mxu0
        %v1353 = vadd.f32 0.0, %v1352
        %v1354 = vpop.f32.mrf.mxu0
        %v1355 = vadd.f32 0.0, %v1354
        %1356 = vmatmul.bf16.gmra.mxu0 %v1043
        %v1357 = vpop.f32.mrf.mxu0
        %v1358 = vadd.f32 0.0, %v1357
        %v1359 = vpop.f32.mrf.mxu0
        %v1360 = vadd.f32 0.0, %v1359
        %1361 = vmatmul.bf16.gmra.mxu0 %v1046
        %v1362 = vpop.f32.mrf.mxu0
        %v1363 = vadd.f32 0.0, %v1362
        %v1364 = vpop.f32.mrf.mxu0
        %v1365 = vadd.f32 0.0, %v1364
        %1366 = vdwg.mxu0
        %1367 = vmatpush.bf16.msra.mxu0 0
        %1368 = vmatpush.bf16.msra.mxu0 0
        %1369 = vmatpush.bf16.msra.mxu0 0
        %1370 = vmatpush.bf16.msra.mxu0 0
        %1371 = vmatpush.bf16.msra.mxu0 0
        %1372 = vmatpush.bf16.msra.mxu0 0
        %1373 = vmatpush.bf16.msra.mxu0 0
        %1374 = vmatpush.bf16.msra.mxu0 %v1068
        %1375 = vmatmul.bf16.gmra.mxu0 %v1025
        %v1376 = vpop.f32.mrf.mxu0
        %v1377 = vadd.f32 0.0, %v1376
        %v1378 = vpop.f32.mrf.mxu0
        %v1379 = vadd.f32 0.0, %v1378
        %1380 = vmatmul.bf16.gmra.mxu0 %v1028
        %v1381 = vpop.f32.mrf.mxu0
        %v1382 = vadd.f32 0.0, %v1381
        %v1383 = vpop.f32.mrf.mxu0
        %v1384 = vadd.f32 0.0, %v1383
        %1385 = vmatmul.bf16.gmra.mxu0 %v1031
        %v1386 = vpop.f32.mrf.mxu0
        %v1387 = vadd.f32 0.0, %v1386
        %v1388 = vpop.f32.mrf.mxu0
        %v1389 = vadd.f32 0.0, %v1388
        %1390 = vmatmul.bf16.gmra.mxu0 %v1034
        %v1391 = vpop.f32.mrf.mxu0
        %v1392 = vadd.f32 0.0, %v1391
        %v1393 = vpop.f32.mrf.mxu0
        %v1394 = vadd.f32 0.0, %v1393
        %1395 = vmatmul.bf16.gmra.mxu0 %v1037
        %v1396 = vpop.f32.mrf.mxu0
        %v1397 = vadd.f32 0.0, %v1396
        %v1398 = vpop.f32.mrf.mxu0
        %v1399 = vadd.f32 0.0, %v1398
        %1400 = vmatmul.bf16.gmra.mxu0 %v1040
        %v1401 = vpop.f32.mrf.mxu0
        %v1402 = vadd.f32 0.0, %v1401
        %v1403 = vpop.f32.mrf.mxu0
        %v1404 = vadd.f32 0.0, %v1403
        %1405 = vmatmul.bf16.gmra.mxu0 %v1043
        %v1406 = vpop.f32.mrf.mxu0
        %v1407 = vadd.f32 0.0, %v1406
        %v1408 = vpop.f32.mrf.mxu0
        %v1409 = vadd.f32 0.0, %v1408
        %1410 = vmatmul.bf16.gmra.mxu0 %v1046
        %v1411 = vpop.f32.mrf.mxu0
        %v1412 = vadd.f32 0.0, %v1411
        %v1413 = vpop.f32.mrf.mxu0
        %v1414 = vadd.f32 0.0, %v1413
        %1415 = vdwg.mxu0
        %1416 = vmatpush.bf16.msra.mxu0 0
        %1417 = vmatpush.bf16.msra.mxu0 0
        %1418 = vmatpush.bf16.msra.mxu0 0
        %1419 = vmatpush.bf16.msra.mxu0 0
        %1420 = vmatpush.bf16.msra.mxu0 0
        %1421 = vmatpush.bf16.msra.mxu0 0
        %1422 = vmatpush.bf16.msra.mxu0 0
        %1423 = vmatpush.bf16.msra.mxu0 %v1071
        %1424 = vmatmul.bf16.gmra.mxu0 %v1025
        %v1425 = vpop.f32.mrf.mxu0
        %v1426 = vadd.f32 0.0, %v1425
        %v1427 = vpop.f32.mrf.mxu0
        %v1428 = vadd.f32 0.0, %v1427
        %1429 = vmatmul.bf16.gmra.mxu0 %v1028
        %v1430 = vpop.f32.mrf.mxu0
        %v1431 = vadd.f32 0.0, %v1430
        %v1432 = vpop.f32.mrf.mxu0
        %v1433 = vadd.f32 0.0, %v1432
        %1434 = vmatmul.bf16.gmra.mxu0 %v1031
        %v1435 = vpop.f32.mrf.mxu0
        %v1436 = vadd.f32 0.0, %v1435
        %v1437 = vpop.f32.mrf.mxu0
        %v1438 = vadd.f32 0.0, %v1437
        %1439 = vmatmul.bf16.gmra.mxu0 %v1034
        %v1440 = vpop.f32.mrf.mxu0
        %v1441 = vadd.f32 0.0, %v1440
        %v1442 = vpop.f32.mrf.mxu0
        %v1443 = vadd.f32 0.0, %v1442
        %1444 = vmatmul.bf16.gmra.mxu0 %v1037
        %v1445 = vpop.f32.mrf.mxu0
        %v1446 = vadd.f32 0.0, %v1445
        %v1447 = vpop.f32.mrf.mxu0
        %v1448 = vadd.f32 0.0, %v1447
        %1449 = vmatmul.bf16.gmra.mxu0 %v1040
        %v1450 = vpop.f32.mrf.mxu0
        %v1451 = vadd.f32 0.0, %v1450
        %v1452 = vpop.f32.mrf.mxu0
        %v1453 = vadd.f32 0.0, %v1452
        %1454 = vmatmul.bf16.gmra.mxu0 %v1043
        %v1455 = vpop.f32.mrf.mxu0
        %v1456 = vadd.f32 0.0, %v1455
        %v1457 = vpop.f32.mrf.mxu0
        %v1458 = vadd.f32 0.0, %v1457
        %1459 = vmatmul.bf16.gmra.mxu0 %v1046
        %v1460 = vpop.f32.mrf.mxu0
        %v1461 = vadd.f32 0.0, %v1460
        %v1462 = vpop.f32.mrf.mxu0
        %v1463 = vadd.f32 0.0, %v1462
        %1464 = vdwg.mxu0
        %v1465 = vld [vmem:[%s367] sm:$0xff]
        %v1466 = vld [vmem:[%s367 + $0x8] sm:$0xff]
        %v1467 = vld [vmem:[%s367 + $0x10] sm:$0xff]
        %v1468 = vld [vmem:[%s367 + $0x18] sm:$0xff]
        %v1469 = vld [vmem:[%s367 + $0x20] sm:$0xff]
        %v1470 = vld [vmem:[%s367 + $0x28] sm:$0xff]
        %v1471 = vld [vmem:[%s367 + $0x30] sm:$0xff]
        %v1472 = vld [vmem:[%s367 + $0x38] sm:$0xff]
        %v1473 = vld [vmem:[%s367 + $0x40] sm:$0xff]
        %v1474 = vld [vmem:[%s367 + $0x48] sm:$0xff]
        %v1475 = vld [vmem:[%s367 + $0x50] sm:$0xff]
        %v1476 = vld [vmem:[%s367 + $0x58] sm:$0xff]
        %v1477 = vld [vmem:[%s367 + $0x60] sm:$0xff]
        %v1478 = vld [vmem:[%s367 + $0x68] sm:$0xff]
        %v1479 = vld [vmem:[%s367 + $0x70] sm:$0xff]
        %v1480 = vld [vmem:[%s367 + $0x78] sm:$0xff]
        %v1481 = vadd.f32 %v1465, %v1083
        %v1482 = vadd.f32 %v1466, %v1085
        %v1483 = vadd.f32 %v1467, %v1088
        %v1484 = vadd.f32 %v1468, %v1090
        %v1485 = vadd.f32 %v1469, %v1093
        %v1486 = vadd.f32 %v1470, %v1095
        %v1487 = vadd.f32 %v1471, %v1098
        %v1488 = vadd.f32 %v1472, %v1100
        %v1489 = vadd.f32 %v1473, %v1103
        %v1490 = vadd.f32 %v1474, %v1105
        %v1491 = vadd.f32 %v1475, %v1108
        %v1492 = vadd.f32 %v1476, %v1110
        %v1493 = vadd.f32 %v1477, %v1113
        %v1494 = vadd.f32 %v1478, %v1115
        %v1495 = vadd.f32 %v1479, %v1118
        %v1496 = vadd.f32 %v1480, %v1120
        %1497 = vst [vmem:[%s419] sm:$0xff] %v1481
        %1498 = vst [vmem:[%s419 + $0x8] sm:$0xff] %v1482
        %1499 = vst [vmem:[%s419 + $0x10] sm:$0xff] %v1483
        %1500 = vst [vmem:[%s419 + $0x18] sm:$0xff] %v1484
        %1501 = vst [vmem:[%s419 + $0x20] sm:$0xff] %v1485
        %1502 = vst [vmem:[%s419 + $0x28] sm:$0xff] %v1486
        %1503 = vst [vmem:[%s419 + $0x30] sm:$0xff] %v1487
        %1504 = vst [vmem:[%s419 + $0x38] sm:$0xff] %v1488
        %1505 = vst [vmem:[%s419 + $0x40] sm:$0xff] %v1489
        %1506 = vst [vmem:[%s419 + $0x48] sm:$0xff] %v1490
        %1507 = vst [vmem:[%s419 + $0x50] sm:$0xff] %v1491
        %1508 = vst [vmem:[%s419 + $0x58] sm:$0xff] %v1492
        %1509 = vst [vmem:[%s419 + $0x60] sm:$0xff] %v1493
        %1510 = vst [vmem:[%s419 + $0x68] sm:$0xff] %v1494
        %1511 = vst [vmem:[%s419 + $0x70] sm:$0xff] %v1495
        %1512 = vst [vmem:[%s419 + $0x78] sm:$0xff] %v1496
        %v1513 = vld [vmem:[%s377] sm:$0xff]
        %v1514 = vld [vmem:[%s377 + $0x8] sm:$0xff]
        %v1515 = vld [vmem:[%s377 + $0x10] sm:$0xff]
        %v1516 = vld [vmem:[%s377 + $0x18] sm:$0xff]
        %v1517 = vld [vmem:[%s377 + $0x20] sm:$0xff]
        %v1518 = vld [vmem:[%s377 + $0x28] sm:$0xff]
        %v1519 = vld [vmem:[%s377 + $0x30] sm:$0xff]
        %v1520 = vld [vmem:[%s377 + $0x38] sm:$0xff]
        %v1521 = vld [vmem:[%s377 + $0x40] sm:$0xff]
        %v1522 = vld [vmem:[%s377 + $0x48] sm:$0xff]
        %v1523 = vld [vmem:[%s377 + $0x50] sm:$0xff]
        %v1524 = vld [vmem:[%s377 + $0x58] sm:$0xff]
        %v1525 = vld [vmem:[%s377 + $0x60] sm:$0xff]
        %v1526 = vld [vmem:[%s377 + $0x68] sm:$0xff]
        %v1527 = vld [vmem:[%s377 + $0x70] sm:$0xff]
        %v1528 = vld [vmem:[%s377 + $0x78] sm:$0xff]
        %v1529 = vadd.f32 %v1513, %v1279
        %v1530 = vadd.f32 %v1514, %v1281
        %v1531 = vadd.f32 %v1515, %v1284
        %v1532 = vadd.f32 %v1516, %v1286
        %v1533 = vadd.f32 %v1517, %v1289
        %v1534 = vadd.f32 %v1518, %v1291
        %v1535 = vadd.f32 %v1519, %v1294
        %v1536 = vadd.f32 %v1520, %v1296
        %v1537 = vadd.f32 %v1521, %v1299
        %v1538 = vadd.f32 %v1522, %v1301
        %v1539 = vadd.f32 %v1523, %v1304
        %v1540 = vadd.f32 %v1524, %v1306
        %v1541 = vadd.f32 %v1525, %v1309
        %v1542 = vadd.f32 %v1526, %v1311
        %v1543 = vadd.f32 %v1527, %v1314
        %v1544 = vadd.f32 %v1528, %v1316
        %1545 = vst [vmem:[%s426] sm:$0xff] %v1529
        %1546 = vst [vmem:[%s426 + $0x8] sm:$0xff] %v1530
        %1547 = vst [vmem:[%s426 + $0x10] sm:$0xff] %v1531
        %1548 = vst [vmem:[%s426 + $0x18] sm:$0xff] %v1532
        %1549 = vst [vmem:[%s426 + $0x20] sm:$0xff] %v1533
        %1550 = vst [vmem:[%s426 + $0x28] sm:$0xff] %v1534
        %1551 = vst [vmem:[%s426 + $0x30] sm:$0xff] %v1535
        %1552 = vst [vmem:[%s426 + $0x38] sm:$0xff] %v1536
        %1553 = vst [vmem:[%s426 + $0x40] sm:$0xff] %v1537
        %1554 = vst [vmem:[%s426 + $0x48] sm:$0xff] %v1538
        %1555 = vst [vmem:[%s426 + $0x50] sm:$0xff] %v1539
        %1556 = vst [vmem:[%s426 + $0x58] sm:$0xff] %v1540
        %1557 = vst [vmem:[%s426 + $0x60] sm:$0xff] %v1541
        %1558 = vst [vmem:[%s426 + $0x68] sm:$0xff] %v1542
        %1559 = vst [vmem:[%s426 + $0x70] sm:$0xff] %v1543
        %1560 = vst [vmem:[%s426 + $0x78] sm:$0xff] %v1544
        %s1561 = scalar_lea.vmem %s367, 128 [#allocation2]
        %v1562 = vld [vmem:[%s1561] sm:$0xff]
        %v1563 = vld [vmem:[%s1561 + $0x8] sm:$0xff]
        %v1564 = vld [vmem:[%s1561 + $0x10] sm:$0xff]
        %v1565 = vld [vmem:[%s1561 + $0x18] sm:$0xff]
        %v1566 = vld [vmem:[%s1561 + $0x20] sm:$0xff]
        %v1567 = vld [vmem:[%s1561 + $0x28] sm:$0xff]
        %v1568 = vld [vmem:[%s1561 + $0x30] sm:$0xff]
        %v1569 = vld [vmem:[%s1561 + $0x38] sm:$0xff]
        %v1570 = vld [vmem:[%s1561 + $0x40] sm:$0xff]
        %v1571 = vld [vmem:[%s1561 + $0x48] sm:$0xff]
        %v1572 = vld [vmem:[%s1561 + $0x50] sm:$0xff]
        %v1573 = vld [vmem:[%s1561 + $0x58] sm:$0xff]
        %v1574 = vld [vmem:[%s1561 + $0x60] sm:$0xff]
        %v1575 = vld [vmem:[%s1561 + $0x68] sm:$0xff]
        %v1576 = vld [vmem:[%s1561 + $0x70] sm:$0xff]
        %v1577 = vld [vmem:[%s1561 + $0x78] sm:$0xff]
        %v1578 = vadd.f32 %v1562, %v1132
        %v1579 = vadd.f32 %v1563, %v1134
        %v1580 = vadd.f32 %v1564, %v1137
        %v1581 = vadd.f32 %v1565, %v1139
        %v1582 = vadd.f32 %v1566, %v1142
        %v1583 = vadd.f32 %v1567, %v1144
        %v1584 = vadd.f32 %v1568, %v1147
        %v1585 = vadd.f32 %v1569, %v1149
        %v1586 = vadd.f32 %v1570, %v1152
        %v1587 = vadd.f32 %v1571, %v1154
        %v1588 = vadd.f32 %v1572, %v1157
        %v1589 = vadd.f32 %v1573, %v1159
        %v1590 = vadd.f32 %v1574, %v1162
        %v1591 = vadd.f32 %v1575, %v1164
        %v1592 = vadd.f32 %v1576, %v1167
        %v1593 = vadd.f32 %v1577, %v1169
        %s1594 = scalar_lea.vmem %s419, 128 [#allocation7]
        %1595 = vst [vmem:[%s1594] sm:$0xff] %v1578
        %1596 = vst [vmem:[%s1594 + $0x8] sm:$0xff] %v1579
        %1597 = vst [vmem:[%s1594 + $0x10] sm:$0xff] %v1580
        %1598 = vst [vmem:[%s1594 + $0x18] sm:$0xff] %v1581
        %1599 = vst [vmem:[%s1594 + $0x20] sm:$0xff] %v1582
        %1600 = vst [vmem:[%s1594 + $0x28] sm:$0xff] %v1583
        %1601 = vst [vmem:[%s1594 + $0x30] sm:$0xff] %v1584
        %1602 = vst [vmem:[%s1594 + $0x38] sm:$0xff] %v1585
        %1603 = vst [vmem:[%s1594 + $0x40] sm:$0xff] %v1586
        %1604 = vst [vmem:[%s1594 + $0x48] sm:$0xff] %v1587
        %1605 = vst [vmem:[%s1594 + $0x50] sm:$0xff] %v1588
        %1606 = vst [vmem:[%s1594 + $0x58] sm:$0xff] %v1589
        %1607 = vst [vmem:[%s1594 + $0x60] sm:$0xff] %v1590
        %1608 = vst [vmem:[%s1594 + $0x68] sm:$0xff] %v1591
        %1609 = vst [vmem:[%s1594 + $0x70] sm:$0xff] %v1592
        %1610 = vst [vmem:[%s1594 + $0x78] sm:$0xff] %v1593
        %s1611 = scalar_lea.vmem %s377, 128 [#allocation5]
        %v1612 = vld [vmem:[%s1611] sm:$0xff]
        %v1613 = vld [vmem:[%s1611 + $0x8] sm:$0xff]
        %v1614 = vld [vmem:[%s1611 + $0x10] sm:$0xff]
        %v1615 = vld [vmem:[%s1611 + $0x18] sm:$0xff]
        %v1616 = vld [vmem:[%s1611 + $0x20] sm:$0xff]
        %v1617 = vld [vmem:[%s1611 + $0x28] sm:$0xff]
        %v1618 = vld [vmem:[%s1611 + $0x30] sm:$0xff]
        %v1619 = vld [vmem:[%s1611 + $0x38] sm:$0xff]
        %v1620 = vld [vmem:[%s1611 + $0x40] sm:$0xff]
        %v1621 = vld [vmem:[%s1611 + $0x48] sm:$0xff]
        %v1622 = vld [vmem:[%s1611 + $0x50] sm:$0xff]
        %v1623 = vld [vmem:[%s1611 + $0x58] sm:$0xff]
        %v1624 = vld [vmem:[%s1611 + $0x60] sm:$0xff]
        %v1625 = vld [vmem:[%s1611 + $0x68] sm:$0xff]
        %v1626 = vld [vmem:[%s1611 + $0x70] sm:$0xff]
        %v1627 = vld [vmem:[%s1611 + $0x78] sm:$0xff]
        %v1628 = vadd.f32 %v1612, %v1328
        %v1629 = vadd.f32 %v1613, %v1330
        %v1630 = vadd.f32 %v1614, %v1333
        %v1631 = vadd.f32 %v1615, %v1335
        %v1632 = vadd.f32 %v1616, %v1338
        %v1633 = vadd.f32 %v1617, %v1340
        %v1634 = vadd.f32 %v1618, %v1343
        %v1635 = vadd.f32 %v1619, %v1345
        %v1636 = vadd.f32 %v1620, %v1348
        %v1637 = vadd.f32 %v1621, %v1350
        %v1638 = vadd.f32 %v1622, %v1353
        %v1639 = vadd.f32 %v1623, %v1355
        %v1640 = vadd.f32 %v1624, %v1358
        %v1641 = vadd.f32 %v1625, %v1360
        %v1642 = vadd.f32 %v1626, %v1363
        %v1643 = vadd.f32 %v1627, %v1365
        %s1644 = scalar_lea.vmem %s426, 128 [#allocation8]
        %1645 = vst [vmem:[%s1644] sm:$0xff] %v1628
        %1646 = vst [vmem:[%s1644 + $0x8] sm:$0xff] %v1629
        %1647 = vst [vmem:[%s1644 + $0x10] sm:$0xff] %v1630
        %1648 = vst [vmem:[%s1644 + $0x18] sm:$0xff] %v1631
        %1649 = vst [vmem:[%s1644 + $0x20] sm:$0xff] %v1632
        %1650 = vst [vmem:[%s1644 + $0x28] sm:$0xff] %v1633
        %1651 = vst [vmem:[%s1644 + $0x30] sm:$0xff] %v1634
        %1652 = vst [vmem:[%s1644 + $0x38] sm:$0xff] %v1635
        %1653 = vst [vmem:[%s1644 + $0x40] sm:$0xff] %v1636
        %1654 = vst [vmem:[%s1644 + $0x48] sm:$0xff] %v1637
        %1655 = vst [vmem:[%s1644 + $0x50] sm:$0xff] %v1638
        %1656 = vst [vmem:[%s1644 + $0x58] sm:$0xff] %v1639
        %1657 = vst [vmem:[%s1644 + $0x60] sm:$0xff] %v1640
        %1658 = vst [vmem:[%s1644 + $0x68] sm:$0xff] %v1641
        %1659 = vst [vmem:[%s1644 + $0x70] sm:$0xff] %v1642
        %1660 = vst [vmem:[%s1644 + $0x78] sm:$0xff] %v1643
        %s1661 = scalar_lea.vmem %s367, 256 [#allocation2]
        %v1662 = vld [vmem:[%s1661] sm:$0xff]
        %v1663 = vld [vmem:[%s1661 + $0x8] sm:$0xff]
        %v1664 = vld [vmem:[%s1661 + $0x10] sm:$0xff]
        %v1665 = vld [vmem:[%s1661 + $0x18] sm:$0xff]
        %v1666 = vld [vmem:[%s1661 + $0x20] sm:$0xff]
        %v1667 = vld [vmem:[%s1661 + $0x28] sm:$0xff]
        %v1668 = vld [vmem:[%s1661 + $0x30] sm:$0xff]
        %v1669 = vld [vmem:[%s1661 + $0x38] sm:$0xff]
        %v1670 = vld [vmem:[%s1661 + $0x40] sm:$0xff]
        %v1671 = vld [vmem:[%s1661 + $0x48] sm:$0xff]
        %v1672 = vld [vmem:[%s1661 + $0x50] sm:$0xff]
        %v1673 = vld [vmem:[%s1661 + $0x58] sm:$0xff]
        %v1674 = vld [vmem:[%s1661 + $0x60] sm:$0xff]
        %v1675 = vld [vmem:[%s1661 + $0x68] sm:$0xff]
        %v1676 = vld [vmem:[%s1661 + $0x70] sm:$0xff]
        %v1677 = vld [vmem:[%s1661 + $0x78] sm:$0xff]
        %v1678 = vadd.f32 %v1662, %v1181
        %v1679 = vadd.f32 %v1663, %v1183
        %v1680 = vadd.f32 %v1664, %v1186
        %v1681 = vadd.f32 %v1665, %v1188
        %v1682 = vadd.f32 %v1666, %v1191
        %v1683 = vadd.f32 %v1667, %v1193
        %v1684 = vadd.f32 %v1668, %v1196
        %v1685 = vadd.f32 %v1669, %v1198
        %v1686 = vadd.f32 %v1670, %v1201
        %v1687 = vadd.f32 %v1671, %v1203
        %v1688 = vadd.f32 %v1672, %v1206
        %v1689 = vadd.f32 %v1673, %v1208
        %v1690 = vadd.f32 %v1674, %v1211
        %v1691 = vadd.f32 %v1675, %v1213
        %v1692 = vadd.f32 %v1676, %v1216
        %v1693 = vadd.f32 %v1677, %v1218
        %s1694 = scalar_lea.vmem %s419, 256 [#allocation7]
        %1695 = vst [vmem:[%s1694] sm:$0xff] %v1678
        %1696 = vst [vmem:[%s1694 + $0x8] sm:$0xff] %v1679
        %1697 = vst [vmem:[%s1694 + $0x10] sm:$0xff] %v1680
        %1698 = vst [vmem:[%s1694 + $0x18] sm:$0xff] %v1681
        %1699 = vst [vmem:[%s1694 + $0x20] sm:$0xff] %v1682
        %1700 = vst [vmem:[%s1694 + $0x28] sm:$0xff] %v1683
        %1701 = vst [vmem:[%s1694 + $0x30] sm:$0xff] %v1684
        %1702 = vst [vmem:[%s1694 + $0x38] sm:$0xff] %v1685
        %1703 = vst [vmem:[%s1694 + $0x40] sm:$0xff] %v1686
        %1704 = vst [vmem:[%s1694 + $0x48] sm:$0xff] %v1687
        %1705 = vst [vmem:[%s1694 + $0x50] sm:$0xff] %v1688
        %1706 = vst [vmem:[%s1694 + $0x58] sm:$0xff] %v1689
        %1707 = vst [vmem:[%s1694 + $0x60] sm:$0xff] %v1690
        %1708 = vst [vmem:[%s1694 + $0x68] sm:$0xff] %v1691
        %1709 = vst [vmem:[%s1694 + $0x70] sm:$0xff] %v1692
        %1710 = vst [vmem:[%s1694 + $0x78] sm:$0xff] %v1693
        %s1711 = scalar_lea.vmem %s377, 256 [#allocation5]
        %v1712 = vld [vmem:[%s1711] sm:$0xff]
        %v1713 = vld [vmem:[%s1711 + $0x8] sm:$0xff]
        %v1714 = vld [vmem:[%s1711 + $0x10] sm:$0xff]
        %v1715 = vld [vmem:[%s1711 + $0x18] sm:$0xff]
        %v1716 = vld [vmem:[%s1711 + $0x20] sm:$0xff]
        %v1717 = vld [vmem:[%s1711 + $0x28] sm:$0xff]
        %v1718 = vld [vmem:[%s1711 + $0x30] sm:$0xff]
        %v1719 = vld [vmem:[%s1711 + $0x38] sm:$0xff]
        %v1720 = vld [vmem:[%s1711 + $0x40] sm:$0xff]
        %v1721 = vld [vmem:[%s1711 + $0x48] sm:$0xff]
        %v1722 = vld [vmem:[%s1711 + $0x50] sm:$0xff]
        %v1723 = vld [vmem:[%s1711 + $0x58] sm:$0xff]
        %v1724 = vld [vmem:[%s1711 + $0x60] sm:$0xff]
        %v1725 = vld [vmem:[%s1711 + $0x68] sm:$0xff]
        %v1726 = vld [vmem:[%s1711 + $0x70] sm:$0xff]
        %v1727 = vld [vmem:[%s1711 + $0x78] sm:$0xff]
        %v1728 = vadd.f32 %v1712, %v1377
        %v1729 = vadd.f32 %v1713, %v1379
        %v1730 = vadd.f32 %v1714, %v1382
        %v1731 = vadd.f32 %v1715, %v1384
        %v1732 = vadd.f32 %v1716, %v1387
        %v1733 = vadd.f32 %v1717, %v1389
        %v1734 = vadd.f32 %v1718, %v1392
        %v1735 = vadd.f32 %v1719, %v1394
        %v1736 = vadd.f32 %v1720, %v1397
        %v1737 = vadd.f32 %v1721, %v1399
        %v1738 = vadd.f32 %v1722, %v1402
        %v1739 = vadd.f32 %v1723, %v1404
        %v1740 = vadd.f32 %v1724, %v1407
        %v1741 = vadd.f32 %v1725, %v1409
        %v1742 = vadd.f32 %v1726, %v1412
        %v1743 = vadd.f32 %v1727, %v1414
        %s1744 = scalar_lea.vmem %s426, 256 [#allocation8]
        %1745 = vst [vmem:[%s1744] sm:$0xff] %v1728
        %1746 = vst [vmem:[%s1744 + $0x8] sm:$0xff] %v1729
        %1747 = vst [vmem:[%s1744 + $0x10] sm:$0xff] %v1730
        %1748 = vst [vmem:[%s1744 + $0x18] sm:$0xff] %v1731
        %1749 = vst [vmem:[%s1744 + $0x20] sm:$0xff] %v1732
        %1750 = vst [vmem:[%s1744 + $0x28] sm:$0xff] %v1733
        %1751 = vst [vmem:[%s1744 + $0x30] sm:$0xff] %v1734
        %1752 = vst [vmem:[%s1744 + $0x38] sm:$0xff] %v1735
        %1753 = vst [vmem:[%s1744 + $0x40] sm:$0xff] %v1736
        %1754 = vst [vmem:[%s1744 + $0x48] sm:$0xff] %v1737
        %1755 = vst [vmem:[%s1744 + $0x50] sm:$0xff] %v1738
        %1756 = vst [vmem:[%s1744 + $0x58] sm:$0xff] %v1739
        %1757 = vst [vmem:[%s1744 + $0x60] sm:$0xff] %v1740
        %1758 = vst [vmem:[%s1744 + $0x68] sm:$0xff] %v1741
        %1759 = vst [vmem:[%s1744 + $0x70] sm:$0xff] %v1742
        %1760 = vst [vmem:[%s1744 + $0x78] sm:$0xff] %v1743
        %s1761 = scalar_lea.vmem %s367, 384 [#allocation2]
        %v1762 = vld [vmem:[%s1761] sm:$0xff]
        %v1763 = vld [vmem:[%s1761 + $0x8] sm:$0xff]
        %v1764 = vld [vmem:[%s1761 + $0x10] sm:$0xff]
        %v1765 = vld [vmem:[%s1761 + $0x18] sm:$0xff]
        %v1766 = vld [vmem:[%s1761 + $0x20] sm:$0xff]
        %v1767 = vld [vmem:[%s1761 + $0x28] sm:$0xff]
        %v1768 = vld [vmem:[%s1761 + $0x30] sm:$0xff]
        %v1769 = vld [vmem:[%s1761 + $0x38] sm:$0xff]
        %v1770 = vld [vmem:[%s1761 + $0x40] sm:$0xff]
        %v1771 = vld [vmem:[%s1761 + $0x48] sm:$0xff]
        %v1772 = vld [vmem:[%s1761 + $0x50] sm:$0xff]
        %v1773 = vld [vmem:[%s1761 + $0x58] sm:$0xff]
        %v1774 = vld [vmem:[%s1761 + $0x60] sm:$0xff]
        %v1775 = vld [vmem:[%s1761 + $0x68] sm:$0xff]
        %v1776 = vld [vmem:[%s1761 + $0x70] sm:$0xff]
        %v1777 = vld [vmem:[%s1761 + $0x78] sm:$0xff]
        %v1778 = vadd.f32 %v1762, %v1230
        %v1779 = vadd.f32 %v1763, %v1232
        %v1780 = vadd.f32 %v1764, %v1235
        %v1781 = vadd.f32 %v1765, %v1237
        %v1782 = vadd.f32 %v1766, %v1240
        %v1783 = vadd.f32 %v1767, %v1242
        %v1784 = vadd.f32 %v1768, %v1245
        %v1785 = vadd.f32 %v1769, %v1247
        %v1786 = vadd.f32 %v1770, %v1250
        %v1787 = vadd.f32 %v1771, %v1252
        %v1788 = vadd.f32 %v1772, %v1255
        %v1789 = vadd.f32 %v1773, %v1257
        %v1790 = vadd.f32 %v1774, %v1260
        %v1791 = vadd.f32 %v1775, %v1262
        %v1792 = vadd.f32 %v1776, %v1265
        %v1793 = vadd.f32 %v1777, %v1267
        %s1794 = scalar_lea.vmem %s419, 384 [#allocation7]
        %1795 = vst [vmem:[%s1794] sm:$0xff] %v1778
        %1796 = vst [vmem:[%s1794 + $0x8] sm:$0xff] %v1779
        %1797 = vst [vmem:[%s1794 + $0x10] sm:$0xff] %v1780
        %1798 = vst [vmem:[%s1794 + $0x18] sm:$0xff] %v1781
        %1799 = vst [vmem:[%s1794 + $0x20] sm:$0xff] %v1782
        %1800 = vst [vmem:[%s1794 + $0x28] sm:$0xff] %v1783
        %1801 = vst [vmem:[%s1794 + $0x30] sm:$0xff] %v1784
        %1802 = vst [vmem:[%s1794 + $0x38] sm:$0xff] %v1785
        %1803 = vst [vmem:[%s1794 + $0x40] sm:$0xff] %v1786
        %1804 = vst [vmem:[%s1794 + $0x48] sm:$0xff] %v1787
        %1805 = vst [vmem:[%s1794 + $0x50] sm:$0xff] %v1788
        %1806 = vst [vmem:[%s1794 + $0x58] sm:$0xff] %v1789
        %1807 = vst [vmem:[%s1794 + $0x60] sm:$0xff] %v1790
        %1808 = vst [vmem:[%s1794 + $0x68] sm:$0xff] %v1791
        %1809 = vst [vmem:[%s1794 + $0x70] sm:$0xff] %v1792
        %1810 = vst [vmem:[%s1794 + $0x78] sm:$0xff] %v1793
        %s1811 = scalar_lea.vmem %s377, 384 [#allocation5]
        %v1812 = vld [vmem:[%s1811] sm:$0xff]
        %v1813 = vld [vmem:[%s1811 + $0x8] sm:$0xff]
        %v1814 = vld [vmem:[%s1811 + $0x10] sm:$0xff]
        %v1815 = vld [vmem:[%s1811 + $0x18] sm:$0xff]
        %v1816 = vld [vmem:[%s1811 + $0x20] sm:$0xff]
        %v1817 = vld [vmem:[%s1811 + $0x28] sm:$0xff]
        %v1818 = vld [vmem:[%s1811 + $0x30] sm:$0xff]
        %v1819 = vld [vmem:[%s1811 + $0x38] sm:$0xff]
        %v1820 = vld [vmem:[%s1811 + $0x40] sm:$0xff]
        %v1821 = vld [vmem:[%s1811 + $0x48] sm:$0xff]
        %v1822 = vld [vmem:[%s1811 + $0x50] sm:$0xff]
        %v1823 = vld [vmem:[%s1811 + $0x58] sm:$0xff]
        %v1824 = vld [vmem:[%s1811 + $0x60] sm:$0xff]
        %v1825 = vld [vmem:[%s1811 + $0x68] sm:$0xff]
        %v1826 = vld [vmem:[%s1811 + $0x70] sm:$0xff]
        %v1827 = vld [vmem:[%s1811 + $0x78] sm:$0xff]
        %v1828 = vadd.f32 %v1812, %v1426
        %v1829 = vadd.f32 %v1813, %v1428
        %v1830 = vadd.f32 %v1814, %v1431
        %v1831 = vadd.f32 %v1815, %v1433
        %v1832 = vadd.f32 %v1816, %v1436
        %v1833 = vadd.f32 %v1817, %v1438
        %v1834 = vadd.f32 %v1818, %v1441
        %v1835 = vadd.f32 %v1819, %v1443
        %v1836 = vadd.f32 %v1820, %v1446
        %v1837 = vadd.f32 %v1821, %v1448
        %v1838 = vadd.f32 %v1822, %v1451
        %v1839 = vadd.f32 %v1823, %v1453
        %v1840 = vadd.f32 %v1824, %v1456
        %v1841 = vadd.f32 %v1825, %v1458
        %v1842 = vadd.f32 %v1826, %v1461
        %v1843 = vadd.f32 %v1827, %v1463
        %s1844 = scalar_lea.vmem %s426, 384 [#allocation8]
        %1845 = vst [vmem:[%s1844] sm:$0xff] %v1828
        %1846 = vst [vmem:[%s1844 + $0x8] sm:$0xff] %v1829
        %1847 = vst [vmem:[%s1844 + $0x10] sm:$0xff] %v1830
        %1848 = vst [vmem:[%s1844 + $0x18] sm:$0xff] %v1831
        %1849 = vst [vmem:[%s1844 + $0x20] sm:$0xff] %v1832
        %1850 = vst [vmem:[%s1844 + $0x28] sm:$0xff] %v1833
        %1851 = vst [vmem:[%s1844 + $0x30] sm:$0xff] %v1834
        %1852 = vst [vmem:[%s1844 + $0x38] sm:$0xff] %v1835
        %1853 = vst [vmem:[%s1844 + $0x40] sm:$0xff] %v1836
        %1854 = vst [vmem:[%s1844 + $0x48] sm:$0xff] %v1837
        %1855 = vst [vmem:[%s1844 + $0x50] sm:$0xff] %v1838
        %1856 = vst [vmem:[%s1844 + $0x58] sm:$0xff] %v1839
        %1857 = vst [vmem:[%s1844 + $0x60] sm:$0xff] %v1840
        %1858 = vst [vmem:[%s1844 + $0x68] sm:$0xff] %v1841
        %1859 = vst [vmem:[%s1844 + $0x70] sm:$0xff] %v1842
        %1860 = vst [vmem:[%s1844 + $0x78] sm:$0xff] %v1843
        %s1861 = sand.u32 %s178, 1
        %s1862 = scalar_lea.sflag [#allocation4], %s1861
        %s1863 = sand.u32 %s178, 1
        %s1864 = smul.addr %s1863, 512
        %s1865 = scalar_lea.vmem [#allocation7], %s1864
        %s1866 = sand.u32 %s206, 1
        %s1867 = scalar_lea.sflag [#allocation9], %s1866
        %s1868 = sand.u32 %s206, 1
        %s1869 = smul.addr %s1868, 512
        %s1870 = scalar_lea.vmem [#allocation8], %s1869
        // Predicated region
        $region49: #{tpu_custom_call.1} parent=39 // pred_check
          %p1871 = pneg %p188
        $region50: #{tpu_custom_call.1} parent=39 // pred_check_branch
          %1873 = sbr.rel (%p1871) target = $region52
        $region51: #{tpu_custom_call.1} parent=39 // pred_region
          #allocation15 [shape = 'u32[6]{0}', space=smem, size = 0x18, scoped, tag = 'DMA stride descriptor']
          %s1874 = smul.u32 16, %s35
          %1876 = vsyncadd %s1862, 0
          %s1877 = smul.addr %s34, 128
          %s1878 = sadd.s32 %s1874, %s1877
          %s1879 = smul.addr %s1878, 8
          %s1880 = scalar_lea.hbm %s5, %s1879
          %s1882 = sshll.u32 1, 14
          %s1883 = sxor.u32 4294967295, %s1882
          %s1886 = sshll.u32 7, 18
          %s1887 = sxor.u32 4294967295, %s1886
          %s1888 = sand.u32 0, %s1887
          %s1890 = sor.u32 %s1888, 0
          %s1891 = sshll.u32 %s1865, 4
          %s1892 = int_to_ptr.vmem [resolvable:$true] %s1891
          %s1893 = sshll.u32 %s1880, 4
          %s1894 = int_to_ptr.hbm [resolvable:$true] %s1893
          %1900 = sst [smem:[#allocation15]] 2048
          %s1901 = scalar_lea.smem [#allocation15], 1
          %1902 = sst [smem:[%s1901]] 4096
          %s1903 = scalar_lea.smem [#allocation15], 2
          %1904 = sst [smem:[%s1903]] 16
          %s1905 = scalar_lea.smem [#allocation15], 3
          %1906 = sst [smem:[%s1905]] 128
          %s1907 = scalar_lea.smem [#allocation15], 4
          %1908 = sst [smem:[%s1907]] 128
          %s1909 = scalar_lea.smem [#allocation15], 5
          %1910 = sst [smem:[%s1909]] 8
          %1912 = dma.general %s1892, 8192, %s1894, %s1862, [#allocation14], [#allocation15], %s1890, 0
        $region52: #{tpu_custom_call.1} parent=39 // pred_fallthru
          _
        // Predicated region
        $region53: #{tpu_custom_call.1} parent=39 // pred_check
          %p1913 = pneg %p216
        $region54: #{tpu_custom_call.1} parent=39 // pred_check_branch
          %1915 = sbr.rel (%p1913) target = $region56
        $region55: #{tpu_custom_call.1} parent=39 // pred_region
          #allocation17 [shape = 'u32[6]{0}', space=smem, size = 0x18, scoped, tag = 'DMA stride descriptor']
          %s1916 = smul.u32 16, %s35
          %1918 = vsyncadd %s1867, 0
          %s1919 = smul.addr %s34, 128
          %s1920 = sadd.s32 %s1916, %s1919
          %s1921 = smul.addr %s1920, 8
          %s1922 = scalar_lea.hbm %s6, %s1921
          %s1924 = sshll.u32 1, 14
          %s1925 = sxor.u32 4294967295, %s1924
          %s1928 = sshll.u32 7, 18
          %s1929 = sxor.u32 4294967295, %s1928
          %s1930 = sand.u32 0, %s1929
          %s1932 = sor.u32 %s1930, 0
          %s1933 = sshll.u32 %s1870, 4
          %s1934 = int_to_ptr.vmem [resolvable:$true] %s1933
          %s1935 = sshll.u32 %s1922, 4
          %s1936 = int_to_ptr.hbm [resolvable:$true] %s1935
          %1942 = sst [smem:[#allocation17]] 2048
          %s1943 = scalar_lea.smem [#allocation17], 1
          %1944 = sst [smem:[%s1943]] 4096
          %s1945 = scalar_lea.smem [#allocation17], 2
          %1946 = sst [smem:[%s1945]] 16
          %s1947 = scalar_lea.smem [#allocation17], 3
          %1948 = sst [smem:[%s1947]] 128
          %s1949 = scalar_lea.smem [#allocation17], 4
          %1950 = sst [smem:[%s1949]] 128
          %s1951 = scalar_lea.smem [#allocation17], 5
          %1952 = sst [smem:[%s1951]] 8
          %1954 = dma.general %s1934, 8192, %s1936, %s1867, [#allocation16], [#allocation17], %s1932, 0
        $region56: #{tpu_custom_call.1} parent=39 // pred_fallthru
          _
      $region40: #{tpu_custom_call.1} parent=5 // pred_fallthru
        _
      %p1955 = scmp.le.s32.totalorder 2, %s25
      // Predicated region
      $region57: #{tpu_custom_call.1} parent=5 // pred_check
        %p1956 = pneg %p1955
      $region58: #{tpu_custom_call.1} parent=5 // pred_check_branch
        %1958 = sbr.rel (%p1956) target = $region60
      $region59: #{tpu_custom_call.1} parent=5 // pred_region
        %s1959 = ssub.s32 %s25, 2
        // Predicated region
        $region61: #{tpu_custom_call.1} parent=59 // pred_check
          %p1960 = pneg %p194
        $region62: #{tpu_custom_call.1} parent=59 // pred_check_branch
          %1962 = sbr.rel (%p1960) target = $region64
        $region63: #{tpu_custom_call.1} parent=59 // pred_region
          %s1963 = sand.u32 %s179, 1
          %s1964 = scalar_lea.sflag [#allocation4], %s1963
          %s1965 = sand.u32 %s179, 1
          %s1966 = smul.addr %s1965, 512
          %s1967 = scalar_lea.vmem [#allocation7], %s1966
          %1969 = dma.done %s1964, 8192
        $region64: #{tpu_custom_call.1} parent=59 // pred_fallthru
          _
        // Predicated region
        $region65: #{tpu_custom_call.1} parent=59 // pred_check
          %p1970 = pneg %p222
        $region66: #{tpu_custom_call.1} parent=59 // pred_check_branch
          %1972 = sbr.rel (%p1970) target = $region68
        $region67: #{tpu_custom_call.1} parent=59 // pred_region
          %s1973 = sand.u32 %s207, 1
          %s1974 = scalar_lea.sflag [#allocation9], %s1973
          %s1975 = sand.u32 %s207, 1
          %s1976 = smul.addr %s1975, 512
          %s1977 = scalar_lea.vmem [#allocation8], %s1976
          %1979 = dma.done %s1974, 8192
        $region68: #{tpu_custom_call.1} parent=59 // pred_fallthru
          _
      $region60: #{tpu_custom_call.1} parent=5 // pred_fallthru
        _
    $region6: #{tpu_custom_call.1} parent=1 // loop_footer
      %s29 = sadd.s32 1, %s25
    $region7: #{tpu_custom_call.1} parent=1 // loop_footer_branch
      %24 = sbr.rel target = $region3
    $region8: #{tpu_custom_call.1} parent=1 // loop_exit
      _
    %1980 = vsyncpa [#allocation3], 1
    %s1981 = scalar_lea.sflag [#allocation3], 1
    %1982 = vsyncpa %s1981, 1
    %1983 = vsyncpa [#allocation6], 1
    %s1984 = scalar_lea.sflag [#allocation6], 1
    %1985 = vsyncpa %s1984, 1
    %1986 = vsyncpa [#allocation4], 1
    %s1987 = scalar_lea.sflag [#allocation4], 1
    %1988 = vsyncpa %s1987, 1
    %1989 = vsyncpa [#allocation9], 1
    %s1990 = scalar_lea.sflag [#allocation9], 1
    %1991 = vsyncpa %s1990, 1

</llo_original>
